<compile_context>
chip_gen: v7x
topology: tpu7x:2x2x1
jax: 0.10.0
libtpu: 0.0.40
codegen_flags: <defaults>
</compile_context>

<pallas_src>
import jax
import jax.numpy as jnp
from jax.experimental import pallas as pl
from jax.experimental.pallas import tpu as pltpu

INPUT_DIM = 37
HIDDEN_DIM = 512
OUTPUT_DIM = 36
PAD_IN = 128        # lane-dense padded input width (zeros + one constant-1 bias col)
PAD_OUT = 128       # lane-dense padded output width (zero cols, sliced off)
BIAS_COL = INPUT_DIM  # column 37 of the padded input carries the constant 1.0
LN_EPS = 1e-5
LEAKY_SLOPE = 0.2
MAX_TB = 1024       # max batch rows per grid step
TB_ALIGN = 16       # bf16 sublane packing for the x tile
MIN_STEPS = 2       # keep both v7x TensorCores busy when B allows

_HI = jax.lax.Precision.HIGHEST


def _round_up(n, m):
    return ((n + m - 1) // m) * m


def _leaky_relu(h):
    return jnp.where(h > 0, h, LEAKY_SLOPE * h)


def _layer_norm_no_affine(h, out_dtype=jnp.bfloat16):
    # LN gamma/beta are folded into the next Linear at param-prep time.  Stats and
    # rsqrt stay f32; the normalize multiply emits `out_dtype` directly so no
    # separate cast pass is needed before the next matmul.
    mu = jnp.mean(h, axis=-1, keepdims=True)
    xc = h - mu
    var = jnp.mean(xc * xc, axis=-1, keepdims=True)
    inv = jax.lax.rsqrt(var + LN_EPS)
    return (xc * inv).astype(out_dtype)


# ---------------------------------------------------------------------------
# Pallas kernel
# ---------------------------------------------------------------------------
def pose_mlp_kernel(x_ref, w1_ref, w2_ref, b2_ref, w3_ref, b3_ref, o_ref):
    # x tile: [TB, PAD_IN] bf16 (bias-as-ones column prepared in the wrapper).
    # Weights: bf16 (MXU-native), VMEM-resident across grid steps. f32 accumulation.

    # Layer 1: Linear (b1 folded into the ones column) -> LeakyReLU -> LayerNorm
    h = jnp.dot(x_ref[...], w1_ref[...], preferred_element_type=jnp.float32)
    h = _leaky_relu(h)
    h = _layer_norm_no_affine(h)                       # -> bf16

    # Layer 2: Linear (LN1 affine folded in) -> LeakyReLU -> LayerNorm
    h = jnp.dot(h, w2_ref[...], preferred_element_type=jnp.float32) + b2_ref[...]
    h = _leaky_relu(h)
    h = _layer_norm_no_affine(h)                       # -> bf16

    # Output layer: Linear (LN2 affine folded in) -> Tanh -> *0.1
    out = jnp.dot(h, w3_ref[...], preferred_element_type=jnp.float32) + b3_ref[...]
    o_ref[...] = (jnp.tanh(out) * 0.1).astype(o_ref.dtype)


# ---------------------------------------------------------------------------
# Wrapper
# ---------------------------------------------------------------------------
def _choose_tiling(B):
    """Rows per grid step (multiple of TB_ALIGN) and padded batch size.

    Targets >=MIN_STEPS grid steps (megacore on v7x) with bounded batch padding,
    capped at MAX_TB rows/step."""
    if B <= TB_ALIGN:
        tb = TB_ALIGN
    else:
        n_steps = max(MIN_STEPS, pl.cdiv(B, MAX_TB))
        tb = min(MAX_TB, _round_up(pl.cdiv(B, n_steps), TB_ALIGN))
    return tb, _round_up(B, tb)


def _pad_and_bias_input(x, b_pad, dtype=jnp.bfloat16):
    """Zero-pad x to [b_pad, PAD_IN], cast, and set the constant-1 bias column."""
    B = x.shape[0]
    xp = jnp.zeros((b_pad, PAD_IN), dtype)
    xp = xp.at[:B, :INPUT_DIM].set(x.astype(dtype))
    xp = xp.at[:, BIAS_COL].set(1.0)
    return xp


def enhanced_pose_model(x, kparams):
    """x: [B, INPUT_DIM] float32. kparams: output of prepare_kernel_params()."""
    B = x.shape[0]
    tb, b_pad = _choose_tiling(B)
    x_pad = _pad_and_bias_input(x, b_pad)              # bf16, lane-dense

    const = lambda i: (0, 0)                           # weights resident across steps
    in_specs = [
        pl.BlockSpec((tb, PAD_IN), lambda i: (i, 0)),          # x tile (bf16)
        pl.BlockSpec((PAD_IN, HIDDEN_DIM), const),             # w1 (bf16, b1 folded)
        pl.BlockSpec((HIDDEN_DIM, HIDDEN_DIM), const),         # w2 (bf16, LN1 folded)
        pl.BlockSpec((1, HIDDEN_DIM), const),                  # b2 (f32, LN1 folded)
        pl.BlockSpec((HIDDEN_DIM, PAD_OUT), const),            # w3 (bf16, LN2 folded)
        pl.BlockSpec((1, PAD_OUT), const),                     # b3 (f32, LN2 folded)
    ]
    out_specs = pl.BlockSpec((tb, PAD_OUT), lambda i: (i, 0))

    flops = 2 * b_pad * (PAD_IN * HIDDEN_DIM
                         + HIDDEN_DIM * HIDDEN_DIM
                         + HIDDEN_DIM * PAD_OUT)
    transcendentals = b_pad * (PAD_OUT + 2)            # tanh per output + 2 rsqrt/row
    weight_bytes = 2 * (PAD_IN * HIDDEN_DIM
                        + HIDDEN_DIM * HIDDEN_DIM
                        + HIDDEN_DIM * PAD_OUT)        # bf16
    bias_bytes = 4 * (HIDDEN_DIM + PAD_OUT)
    io_bytes = b_pad * (2 * PAD_IN + 4 * PAD_OUT)      # bf16 in, f32 out
    cost = pl.CostEstimate(flops=flops,
                           transcendentals=transcendentals,
                           bytes_accessed=weight_bytes + bias_bytes + io_bytes)

    out = pl.pallas_call(
        pose_mlp_kernel,
        out_shape=jax.ShapeDtypeStruct((b_pad, PAD_OUT), jnp.float32),
        grid=(b_pad // tb,),
        in_specs=in_specs,
        out_specs=out_specs,
        compiler_params=pltpu.CompilerParams(
            dimension_semantics=("parallel",),          # megacore sharding on v7x
            vmem_limit_bytes=32 * 1024 * 1024),         # headroom for tb up to 1024
        cost_estimate=cost,
    )(x_pad, kparams["w1"], kparams["w2"], kparams["b2"],
      kparams["w3"], kparams["b3"])

    return out[:B, :OUTPUT_DIM]


# ---------------------------------------------------------------------------
# Parameters & references
# ---------------------------------------------------------------------------
def init_params(key):
    """Deterministic synthetic init mimicking kaiming_normal_(mode='fan_out',
    nonlinearity='leaky_relu'), biases zero, LN gamma=1 beta=0.  Linear weights
    stored pre-transposed as [in, out]."""
    k1, k2, k3 = jax.random.split(key, 3)
    gain = jnp.sqrt(2.0)

    def kaiming(k, fan_in, fan_out):
        std = gain / jnp.sqrt(jnp.float32(fan_out))
        return jax.random.normal(k, (fan_in, fan_out), jnp.float32) * std

    return {
        "w1": kaiming(k1, INPUT_DIM, HIDDEN_DIM),
        "b1": jnp.zeros((1, HIDDEN_DIM), jnp.float32),
        "g1": jnp.ones((1, HIDDEN_DIM), jnp.float32),
        "be1": jnp.zeros((1, HIDDEN_DIM), jnp.float32),
        "w2": kaiming(k2, HIDDEN_DIM, HIDDEN_DIM),
        "b2": jnp.zeros((1, HIDDEN_DIM), jnp.float32),
        "g2": jnp.ones((1, HIDDEN_DIM), jnp.float32),
        "be2": jnp.zeros((1, HIDDEN_DIM), jnp.float32),
        "w3": kaiming(k3, HIDDEN_DIM, OUTPUT_DIM),
        "b3": jnp.zeros((1, OUTPUT_DIM), jnp.float32),
    }


def prepare_kernel_params(p, weights_dtype=jnp.bfloat16):
    """One-time constant folding + layout prep (all folds computed in f32):
      * fold LN1 affine (g1,be1) into (w2,b2) and LN2 affine (g2,be2) into (w3,b3)
      * fold b1 into padded w1 via the constant-1 input column
      * zero-pad w1 rows 37->128 and w3/b3 cols 36->128 (lane-dense tiles)
      * cast matmul weights to `weights_dtype` (bf16 for the kernel); biases f32."""
    w2 = p["g1"].reshape(-1, 1) * p["w2"]
    b2 = jnp.dot(p["be1"], p["w2"], precision=_HI) + p["b2"]
    w3 = p["g2"].reshape(-1, 1) * p["w3"]
    b3 = jnp.dot(p["be2"], p["w3"], precision=_HI) + p["b3"]

    w1p = jnp.zeros((PAD_IN, HIDDEN_DIM), jnp.float32)
    w1p = w1p.at[:INPUT_DIM].set(p["w1"])
    w1p = w1p.at[BIAS_COL].set(p["b1"][0])             # b1 rides the ones column
    w3p = jnp.zeros((HIDDEN_DIM, PAD_OUT), jnp.float32).at[:, :OUTPUT_DIM].set(w3)
    b3p = jnp.zeros((1, PAD_OUT), jnp.float32).at[:, :OUTPUT_DIM].set(b3)

    return {
        "w1": w1p.astype(weights_dtype),
        "w2": w2.astype(weights_dtype), "b2": b2,
        "w3": w3p.astype(weights_dtype), "b3": b3p,
    }


def reference_forward(x, p):
    """Pure-JAX f32 reference matching the PyTorch module exactly (HIGHEST matmul
    precision so it is a true f32 baseline on TPU)."""
    h = jnp.dot(x, p["w1"], precision=_HI) + p["b1"]
    h = _leaky_relu(h)
    h = (h - h.mean(-1, keepdims=True)) / jnp.sqrt(h.var(-1, keepdims=True) + LN_EPS)
    h = h * p["g1"] + p["be1"]
    h = jnp.dot(h, p["w2"], precision=_HI) + p["b2"]
    h = _leaky_relu(h)
    h = (h - h.mean(-1, keepdims=True)) / jnp.sqrt(h.var(-1, keepdims=True) + LN_EPS)
    h = h * p["g2"] + p["be2"]
    return jnp.tanh(jnp.dot(h, p["w3"], precision=_HI) + p["b3"]) * 0.1


def folded_forward_f32(x, kp_f32):
    """Folded-parameter forward entirely in f32 — verifies the LN-affine / bias /
    padding folds independently of any bf16 effects."""
    xp = _pad_and_bias_input(x, x.shape[0], dtype=jnp.float32)
    h = jnp.dot(xp, kp_f32["w1"], precision=_HI)
    h = _leaky_relu(h)
    h = _layer_norm_no_affine(h, out_dtype=jnp.float32)
    h = jnp.dot(h, kp_f32["w2"], precision=_HI) + kp_f32["b2"]
    h = _leaky_relu(h)
    h = _layer_norm_no_affine(h, out_dtype=jnp.float32)
    out = jnp.tanh(jnp.dot(h, kp_f32["w3"], precision=_HI) + kp_f32["b3"]) * 0.1
    return out[:, :OUTPUT_DIM]


def kernel_math_sim(x, kparams):
    """Pure-JAX simulation of the exact kernel math (bf16 matmul operands, f32
    accumulation/stats) for a tight kernel-correctness check."""
    xp = _pad_and_bias_input(x, x.shape[0])
    h = jnp.dot(xp, kparams["w1"], preferred_element_type=jnp.float32)
    h = _leaky_relu(h)
    h = _layer_norm_no_affine(h)
    h = jnp.dot(h, kparams["w2"], preferred_element_type=jnp.float32) + kparams["b2"]
    h = _leaky_relu(h)
    h = _layer_norm_no_affine(h)
    out = jnp.tanh(jnp.dot(h, kparams["w3"],
                           preferred_element_type=jnp.float32) + kparams["b3"]) * 0.1
    return out[:, :OUTPUT_DIM]


if __name__ == "__main__":
    key = jax.random.PRNGKey(0)
    kp, kx, kx2, kr = jax.random.split(key, 4)

    # --- PyTorch-faithful init, small batch (single grid step) -----------------
    params = init_params(kp)
    kparams = prepare_kernel_params(params)

    B = 8
    x = jax.random.normal(kx, (B, INPUT_DIM), jnp.float32)

    out = jax.block_until_ready(enhanced_pose_model(x, kparams))
    assert out.shape == (B, OUTPUT_DIM)
    assert bool(jnp.all(jnp.isfinite(out)))

    # Tight check: kernel vs a pure-JAX simulation of the exact kernel math.
    sim = kernel_math_sim(x, kparams)
    assert jnp.allclose(out, sim, atol=5e-4), "kernel != bf16-math simulation"
    # End-to-end check vs the full-f32 reference (bf16 operand rounding only).
    ref = reference_forward(x, params)
    assert jnp.allclose(out, ref, atol=1e-2), "kernel != f32 reference"

    # --- randomized LN affines / biases: verify folds + multi-step grid --------
    p_rand = dict(params)
    r = jax.random.split(kr, 7)
    p_rand["b1"] = 0.1 * jax.random.normal(r[0], (1, HIDDEN_DIM), jnp.float32)
    p_rand["g1"] = 1.0 + 0.3 * jax.random.normal(r[1], (1, HIDDEN_DIM), jnp.float32)
    p_rand["be1"] = 0.2 * jax.random.normal(r[2], (1, HIDDEN_DIM), jnp.float32)
    p_rand["b2"] = 0.1 * jax.random.normal(r[3], (1, HIDDEN_DIM), jnp.float32)
    p_rand["g2"] = 1.0 + 0.3 * jax.random.normal(r[4], (1, HIDDEN_DIM), jnp.float32)
    p_rand["be2"] = 0.2 * jax.random.normal(r[5], (1, HIDDEN_DIM), jnp.float32)
    p_rand["b3"] = 0.1 * jax.random.normal(r[6], (1, OUTPUT_DIM), jnp.float32)

    x2 = jax.random.normal(kx2, (40, INPUT_DIM), jnp.float32)   # -> 2 grid steps
    ref2 = reference_forward(x2, p_rand)

    # Fold algebra verified entirely in f32 (no bf16 effects).
    kp_f32 = prepare_kernel_params(p_rand, weights_dtype=jnp.float32)
    folded2 = folded_forward_f32(x2, kp_f32)
    assert jnp.allclose(folded2, ref2, atol=2e-5), "LN/bias fold mismatch (f32)"

    kparams2 = prepare_kernel_params(p_rand)
    out2 = jax.block_until_ready(enhanced_pose_model(x2, kparams2))
    assert out2.shape == (40, OUTPUT_DIM)
    assert jnp.allclose(out2, kernel_math_sim(x2, kparams2), atol=5e-4), \
        "kernel != bf16-math simulation (multi-step grid)"
    assert jnp.allclose(out2, ref2, atol=1e-2), "kernel != f32 reference (rand params)"

    print("KERNEL_OK")
</pallas_src>

<mosaic_0001>
module attributes {stable_mosaic.version = 11 : i64} {
  func.func @pose_mlp_kernel(%arg0: i32, %arg1: memref<16x128xbf16, #tpu.memory_space<vmem>>, %arg2: memref<128x512xbf16, #tpu.memory_space<vmem>>, %arg3: memref<512x512xbf16, #tpu.memory_space<vmem>>, %arg4: memref<1x512xf32, #tpu.memory_space<vmem>>, %arg5: memref<512x128xbf16, #tpu.memory_space<vmem>>, %arg6: memref<1x128xf32, #tpu.memory_space<vmem>>, %arg7: memref<16x128xf32, #tpu.memory_space<vmem>>) attributes {dimension_semantics = [#tpu.dimension_semantics<parallel>], iteration_bounds = array<i64: 1>, scalar_prefetch = 0 : i64, scratch_operands = 0 : i64, tpu.core_type = #tpu.core_type<tc>, window_params = [{transform_indices = @transform_0, window_bounds = array<i64: 16, 128>}, {pipeline_mode = #tpu.pipeline_mode<synchronous>, transform_indices = @transform_1, window_bounds = array<i64: 128, 512>}, {pipeline_mode = #tpu.pipeline_mode<synchronous>, transform_indices = @transform_2, window_bounds = array<i64: 512, 512>}, {pipeline_mode = #tpu.pipeline_mode<synchronous>, transform_indices = @transform_3, window_bounds = array<i64: 1, 512>}, {pipeline_mode = #tpu.pipeline_mode<synchronous>, transform_indices = @transform_4, window_bounds = array<i64: 512, 128>}, {pipeline_mode = #tpu.pipeline_mode<synchronous>, transform_indices = @transform_5, window_bounds = array<i64: 1, 128>}, {transform_indices = @transform_6, window_bounds = array<i64: 16, 128>}]} {
    %c0 = arith.constant 0 : index
    %c0_0 = arith.constant 0 : index
    %0 = vector.load %arg1[%c0, %c0_0] : memref<16x128xbf16, #tpu.memory_space<vmem>>, vector<16x128xbf16>
    %c0_1 = arith.constant 0 : index
    %c0_2 = arith.constant 0 : index
    %1 = vector.load %arg2[%c0_1, %c0_2] : memref<128x512xbf16, #tpu.memory_space<vmem>>, vector<128x512xbf16>
    %cst = arith.constant dense<0.000000e+00> : vector<16x512xf32>
    %2 = tpu.matmul %0, %1, %cst {dimension_numbers = #tpu.dot_dimension_numbers<[1], [0], [0], [1], [0, 0, 1, 1], [], []>} : vector<16x128xbf16>, vector<128x512xbf16>, vector<16x512xf32> -> vector<16x512xf32>
    %cst_3 = arith.constant 0.000000e+00 : f32
    %3 = vector.broadcast %cst_3 : f32 to vector<16x512xf32>
    %4 = arith.cmpf ogt, %2, %3 : vector<16x512xf32>
    %cst_4 = arith.constant 2.000000e-01 : f32
    %5 = vector.broadcast %cst_4 : f32 to vector<16x512xf32>
    %6 = arith.mulf %5, %2 : vector<16x512xf32>
    %7 = arith.select %4, %2, %6 : vector<16x512xi1>, vector<16x512xf32>
    %cst_5 = arith.constant dense<0.000000e+00> : vector<16xf32>
    %8 = vector.multi_reduction <add>, %7, %cst_5 [1] : vector<16x512xf32> to vector<16xf32>
    %9 = vector.shape_cast %8 : vector<16xf32> to vector<16x1xf32>
    %cst_6 = arith.constant 5.120000e+02 : f32
    %10 = vector.broadcast %cst_6 : f32 to vector<16x1xf32>
    %11 = arith.divf %9, %10 : vector<16x1xf32>
    %12 = vector.broadcast %11 : vector<16x1xf32> to vector<16x512xf32>
    %13 = arith.subf %7, %12 : vector<16x512xf32>
    %14 = arith.mulf %13, %13 : vector<16x512xf32>
    %cst_7 = arith.constant dense<0.000000e+00> : vector<16xf32>
    %15 = vector.multi_reduction <add>, %14, %cst_7 [1] : vector<16x512xf32> to vector<16xf32>
    %16 = vector.shape_cast %15 : vector<16xf32> to vector<16x1xf32>
    %cst_8 = arith.constant 5.120000e+02 : f32
    %17 = vector.broadcast %cst_8 : f32 to vector<16x1xf32>
    %18 = arith.divf %16, %17 : vector<16x1xf32>
    %cst_9 = arith.constant 9.99999974E-6 : f32
    %19 = vector.broadcast %cst_9 : f32 to vector<16x1xf32>
    %20 = arith.addf %18, %19 : vector<16x1xf32>
    %21 = math.rsqrt %20 : vector<16x1xf32>
    %22 = vector.broadcast %21 : vector<16x1xf32> to vector<16x512xf32>
    %23 = arith.mulf %13, %22 : vector<16x512xf32>
    %24 = arith.truncf %23 : vector<16x512xf32> to vector<16x512xbf16>
    %c0_10 = arith.constant 0 : index
    %c0_11 = arith.constant 0 : index
    %25 = vector.load %arg3[%c0_10, %c0_11] : memref<512x512xbf16, #tpu.memory_space<vmem>>, vector<512x512xbf16>
    %cst_12 = arith.constant dense<0.000000e+00> : vector<16x512xf32>
    %26 = tpu.matmul %24, %25, %cst_12 {dimension_numbers = #tpu.dot_dimension_numbers<[1], [0], [0], [1], [0, 0, 1, 1], [], []>} : vector<16x512xbf16>, vector<512x512xbf16>, vector<16x512xf32> -> vector<16x512xf32>
    %c0_13 = arith.constant 0 : index
    %c0_14 = arith.constant 0 : index
    %27 = vector.load %arg4[%c0_13, %c0_14] : memref<1x512xf32, #tpu.memory_space<vmem>>, vector<1x512xf32>
    %28 = vector.broadcast %27 : vector<1x512xf32> to vector<16x512xf32>
    %29 = arith.addf %26, %28 : vector<16x512xf32>
    %cst_15 = arith.constant 0.000000e+00 : f32
    %30 = vector.broadcast %cst_15 : f32 to vector<16x512xf32>
    %31 = arith.cmpf ogt, %29, %30 : vector<16x512xf32>
    %cst_16 = arith.constant 2.000000e-01 : f32
    %32 = vector.broadcast %cst_16 : f32 to vector<16x512xf32>
    %33 = arith.mulf %32, %29 : vector<16x512xf32>
    %34 = arith.select %31, %29, %33 : vector<16x512xi1>, vector<16x512xf32>
    %cst_17 = arith.constant dense<0.000000e+00> : vector<16xf32>
    %35 = vector.multi_reduction <add>, %34, %cst_17 [1] : vector<16x512xf32> to vector<16xf32>
    %36 = vector.shape_cast %35 : vector<16xf32> to vector<16x1xf32>
    %cst_18 = arith.constant 5.120000e+02 : f32
    %37 = vector.broadcast %cst_18 : f32 to vector<16x1xf32>
    %38 = arith.divf %36, %37 : vector<16x1xf32>
    %39 = vector.broadcast %38 : vector<16x1xf32> to vector<16x512xf32>
    %40 = arith.subf %34, %39 : vector<16x512xf32>
    %41 = arith.mulf %40, %40 : vector<16x512xf32>
    %cst_19 = arith.constant dense<0.000000e+00> : vector<16xf32>
    %42 = vector.multi_reduction <add>, %41, %cst_19 [1] : vector<16x512xf32> to vector<16xf32>
    %43 = vector.shape_cast %42 : vector<16xf32> to vector<16x1xf32>
    %cst_20 = arith.constant 5.120000e+02 : f32
    %44 = vector.broadcast %cst_20 : f32 to vector<16x1xf32>
    %45 = arith.divf %43, %44 : vector<16x1xf32>
    %cst_21 = arith.constant 9.99999974E-6 : f32
    %46 = vector.broadcast %cst_21 : f32 to vector<16x1xf32>
    %47 = arith.addf %45, %46 : vector<16x1xf32>
    %48 = math.rsqrt %47 : vector<16x1xf32>
    %49 = vector.broadcast %48 : vector<16x1xf32> to vector<16x512xf32>
    %50 = arith.mulf %40, %49 : vector<16x512xf32>
    %51 = arith.truncf %50 : vector<16x512xf32> to vector<16x512xbf16>
    %c0_22 = arith.constant 0 : index
    %c0_23 = arith.constant 0 : index
    %52 = vector.load %arg5[%c0_22, %c0_23] : memref<512x128xbf16, #tpu.memory_space<vmem>>, vector<512x128xbf16>
    %cst_24 = arith.constant dense<0.000000e+00> : vector<16x128xf32>
    %53 = tpu.matmul %51, %52, %cst_24 {dimension_numbers = #tpu.dot_dimension_numbers<[1], [0], [0], [1], [0, 0, 1, 1], [], []>} : vector<16x512xbf16>, vector<512x128xbf16>, vector<16x128xf32> -> vector<16x128xf32>
    %c0_25 = arith.constant 0 : index
    %c0_26 = arith.constant 0 : index
    %54 = vector.load %arg6[%c0_25, %c0_26] : memref<1x128xf32, #tpu.memory_space<vmem>>, vector<1x128xf32>
    %55 = vector.broadcast %54 : vector<1x128xf32> to vector<16x128xf32>
    %56 = arith.addf %53, %55 : vector<16x128xf32>
    %57 = math.tanh %56 : vector<16x128xf32>
    %cst_27 = arith.constant 1.000000e-01 : f32
    %58 = vector.broadcast %cst_27 : f32 to vector<16x128xf32>
    %59 = arith.mulf %57, %58 : vector<16x128xf32>
    %c0_28 = arith.constant 0 : index
    %c0_29 = arith.constant 0 : index
    %60 = vector.load %arg7[%c0_28, %c0_29] : memref<16x128xf32, #tpu.memory_space<vmem>>, vector<16x128xf32>
    tpu.vector_store %arg7[%c0_28, %c0_29], %59 {strides = array<i32>} : memref<16x128xf32, #tpu.memory_space<vmem>>, vector<16x128xf32>,
    return
  }
  func.func @transform_0(%arg0: i32) -> (i32, i32) {
    %c0_i32 = arith.constant 0 : i32
    %c0_i32_0 = arith.constant 0 : i32
    return %arg0, %c0_i32 : i32, i32
  }
  func.func @transform_1(%arg0: i32) -> (i32, i32) {
    %c0_i32 = arith.constant 0 : i32
    %c0_i32_0 = arith.constant 0 : i32
    %c0_i32_1 = arith.constant 0 : i32
    return %c0_i32, %c0_i32_0 : i32, i32
  }
  func.func @transform_2(%arg0: i32) -> (i32, i32) {
    %c0_i32 = arith.constant 0 : i32
    %c0_i32_0 = arith.constant 0 : i32
    %c0_i32_1 = arith.constant 0 : i32
    return %c0_i32, %c0_i32_0 : i32, i32
  }
  func.func @transform_3(%arg0: i32) -> (i32, i32) {
    %c0_i32 = arith.constant 0 : i32
    %c0_i32_0 = arith.constant 0 : i32
    %c0_i32_1 = arith.constant 0 : i32
    return %c0_i32, %c0_i32_0 : i32, i32
  }
  func.func @transform_4(%arg0: i32) -> (i32, i32) {
    %c0_i32 = arith.constant 0 : i32
    %c0_i32_0 = arith.constant 0 : i32
    %c0_i32_1 = arith.constant 0 : i32
    return %c0_i32, %c0_i32_0 : i32, i32
  }
  func.func @transform_5(%arg0: i32) -> (i32, i32) {
    %c0_i32 = arith.constant 0 : i32
    %c0_i32_0 = arith.constant 0 : i32
    %c0_i32_1 = arith.constant 0 : i32
    return %c0_i32, %c0_i32_0 : i32, i32
  }
  func.func @transform_6(%arg0: i32) -> (i32, i32) {
    %c0_i32 = arith.constant 0 : i32
    %c0_i32_0 = arith.constant 0 : i32
    return %arg0, %c0_i32 : i32, i32
  }
}

</mosaic_0001>

<llo_original>
// kernel: tpu_custom_call.1
$region0: #{tpu_custom_call.1}
  #allocation0 [shape = 'u32[]', space=smem, size = 0x4, offset = 0x4, fixed_abs, tag = 'smem constant byte address 0x4 - core index']
  #allocation1 [shape = 'u32[144,128]{1,0:T(1,128)}', space=vmem, size = 0x12000, scoped, tag = 'internal scratch']
  %s0 = inlined_call_operand.hbm [shape: bf16[16,128], index: 0, kind: input, shape index: {}]
  %s1 = inlined_call_operand.hbm [shape: bf16[128,512], index: 1, kind: input, shape index: {}]
  %s2 = inlined_call_operand.hbm [shape: bf16[512,512], index: 2, kind: input, shape index: {}]
  %s3 = inlined_call_operand.vmem [shape: f32[1,512], index: 3, kind: input, shape index: {}]
  %s4 = inlined_call_operand.hbm [shape: bf16[512,128], index: 4, kind: input, shape index: {}]
  %s5 = inlined_call_operand.vmem [shape: f32[1,128], index: 5, kind: input, shape index: {}]
  %s6 = inlined_call_operand.hbm [shape: f32[16,128], index: 6, kind: output, shape index: {}]
  %s7 = sld [smem:[#allocation0]]
  $region50: #{tpu_custom_call.1} parent=0
    _
  %s9 = ssub.s32 1, %s7
  %s10 = scalar_select 0, %s9, %s7
  $region1: #{tpu_custom_call.1} parent=0
    #allocation2 [shape = 'u8[4096]{0}', space=vmem, size = 0x1000, scoped, tag = 'input window, operand 0, single buffered']
    #allocation3 [shape = 's32[1]{0}', space=sflag, size = 0x4, scoped, tag = 'scoped memory for tpu_custom_call.1']
    #allocation4 [shape = 's32[1]{0}', space=sflag, size = 0x4, scoped, tag = 'scoped memory for tpu_custom_call.1']
    #allocation5 [shape = 'u8[131072]{0}', space=vmem, size = 0x20000, scoped, tag = 'input window, operand 1, single buffered']
    #allocation6 [shape = 's32[1]{0}', space=sflag, size = 0x4, scoped, tag = 'scoped memory for tpu_custom_call.1']
    #allocation7 [shape = 'u8[524288]{0}', space=vmem, size = 0x80000, scoped, tag = 'input window, operand 2, single buffered']
    #allocation8 [shape = 'u8[131072]{0}', space=vmem, size = 0x20000, scoped, tag = 'input window, operand 4, single buffered']
    #allocation9 [shape = 's32[1]{0}', space=sflag, size = 0x4, scoped, tag = 'scoped memory for tpu_custom_call.1']
    #allocation10 [shape = 'u8[8192]{0}', space=vmem, size = 0x2000, scoped, tag = 'output window, operand 0, single buffered']
    %11 = vsyncpa [#allocation3], 0
    %12 = vsyncpa [#allocation6], 0
    %13 = vsyncpa [#allocation9], 0
    %14 = vsyncpa [#allocation4], 0
    // Predicated region
    $region2: #{tpu_custom_call.1} parent=1 // pred_check
      _
    $region3: #{tpu_custom_call.1} parent=1 // pred_check_branch
      %16 = sbr.rel (0) target = $region5
    $region4: #{tpu_custom_call.1} parent=1 // pred_region
      %s18 = ssub.s32 128, 128
      %19 = vsyncadd [#allocation3], %s18
      %s20 = sshll.u32 [#allocation2], 4
      %s21 = int_to_ptr.vmem [resolvable:$true] %s20
      %26 = dma.hbm_to_vmem [thread:$0]  %s0, 128, %s21, [#allocation3], 64, 64, 4
    $region5: #{tpu_custom_call.1} parent=1 // pred_fallthru
      _
    // Predicated region
    $region6: #{tpu_custom_call.1} parent=1 // pred_check
      _
    $region7: #{tpu_custom_call.1} parent=1 // pred_check_branch
      %28 = sbr.rel (0) target = $region9
    $region8: #{tpu_custom_call.1} parent=1 // pred_region
      %s30 = ssub.s32 4096, 4096
      %31 = vsyncadd [#allocation6], %s30
      %s32 = sshll.u32 [#allocation5], 4
      %s33 = int_to_ptr.vmem [resolvable:$true] %s32
      %38 = dma.hbm_to_vmem [thread:$0]  %s1, 4096, %s33, [#allocation6], 256, 256, 16
    $region9: #{tpu_custom_call.1} parent=1 // pred_fallthru
      _
    // Predicated region
    $region10: #{tpu_custom_call.1} parent=1 // pred_check
      _
    $region11: #{tpu_custom_call.1} parent=1 // pred_check_branch
      %40 = sbr.rel (0) target = $region13
    $region12: #{tpu_custom_call.1} parent=1 // pred_region
      %s42 = ssub.s32 16384, 16384
      %43 = vsyncadd [#allocation6], %s42
      %s44 = sshll.u32 [#allocation7], 4
      %s45 = int_to_ptr.vmem [resolvable:$true] %s44
      %50 = dma.hbm_to_vmem [thread:$0]  %s2, 16384, %s45, [#allocation6], 256, 256, 16
    $region13: #{tpu_custom_call.1} parent=1 // pred_fallthru
      _
    // Predicated region
    $region14: #{tpu_custom_call.1} parent=1 // pred_check
      _
    $region15: #{tpu_custom_call.1} parent=1 // pred_check_branch
      %52 = sbr.rel (0) target = $region17
    $region16: #{tpu_custom_call.1} parent=1 // pred_region
      _
    $region17: #{tpu_custom_call.1} parent=1 // pred_fallthru
      _
    // Predicated region
    $region18: #{tpu_custom_call.1} parent=1 // pred_check
      _
    $region19: #{tpu_custom_call.1} parent=1 // pred_check_branch
      %54 = sbr.rel (0) target = $region21
    $region20: #{tpu_custom_call.1} parent=1 // pred_region
      %s56 = ssub.s32 4096, 4096
      %57 = vsyncadd [#allocation9], %s56
      %s58 = sshll.u32 [#allocation8], 4
      %s59 = int_to_ptr.vmem [resolvable:$true] %s58
      %64 = dma.hbm_to_vmem [thread:$0]  %s4, 4096, %s59, [#allocation9], 64, 64, 4
    $region21: #{tpu_custom_call.1} parent=1 // pred_fallthru
      _
    // Predicated region
    $region22: #{tpu_custom_call.1} parent=1 // pred_check
      _
    $region23: #{tpu_custom_call.1} parent=1 // pred_check_branch
      %66 = sbr.rel (0) target = $region25
    $region24: #{tpu_custom_call.1} parent=1 // pred_region
      _
    $region25: #{tpu_custom_call.1} parent=1 // pred_fallthru
      _
    // Predicated region
    $region26: #{tpu_custom_call.1} parent=1 // pred_check
      _
    $region27: #{tpu_custom_call.1} parent=1 // pred_check_branch
      %68 = sbr.rel (0) target = $region29
    $region28: #{tpu_custom_call.1} parent=1 // pred_region
      %69 = dma.done [#allocation3], 128
    $region29: #{tpu_custom_call.1} parent=1 // pred_fallthru
      _
    // Predicated region
    $region30: #{tpu_custom_call.1} parent=1 // pred_check
      _
    $region31: #{tpu_custom_call.1} parent=1 // pred_check_branch
      %71 = sbr.rel (0) target = $region33
    $region32: #{tpu_custom_call.1} parent=1 // pred_region
      %72 = dma.done [#allocation6], 4096
    $region33: #{tpu_custom_call.1} parent=1 // pred_fallthru
      _
    // Predicated region
    $region34: #{tpu_custom_call.1} parent=1 // pred_check
      _
    $region35: #{tpu_custom_call.1} parent=1 // pred_check_branch
      %74 = sbr.rel (0) target = $region37
    $region36: #{tpu_custom_call.1} parent=1 // pred_region
      %75 = dma.done [#allocation6], 16384
    $region37: #{tpu_custom_call.1} parent=1 // pred_fallthru
      _
    // Predicated region
    $region38: #{tpu_custom_call.1} parent=1 // pred_check
      _
    $region39: #{tpu_custom_call.1} parent=1 // pred_check_branch
      %77 = sbr.rel (0) target = $region41
    $region40: #{tpu_custom_call.1} parent=1 // pred_region
      %78 = dma.done [#allocation9], 4096
    $region41: #{tpu_custom_call.1} parent=1 // pred_fallthru
      _
    %v80 = vld [vmem:[#allocation2] sm:$0xf]
    %v81 = vld [vmem:[#allocation2 + $0x4] sm:$0xf]
    %v82 = vld [vmem:[#allocation5] sm:$0xff]
    %v83 = vld [vmem:[#allocation5 + $0x8] sm:$0xff]
    %v84 = vld [vmem:[#allocation5 + $0x10] sm:$0xff]
    %v85 = vld [vmem:[#allocation5 + $0x18] sm:$0xff]
    %v86 = vld [vmem:[#allocation5 + $0x20] sm:$0xff]
    %v87 = vld [vmem:[#allocation5 + $0x28] sm:$0xff]
    %v88 = vld [vmem:[#allocation5 + $0x30] sm:$0xff]
    %v89 = vld [vmem:[#allocation5 + $0x38] sm:$0xff]
    %v90 = vld [vmem:[#allocation5 + $0x40] sm:$0xff]
    %v91 = vld [vmem:[#allocation5 + $0x48] sm:$0xff]
    %v92 = vld [vmem:[#allocation5 + $0x50] sm:$0xff]
    %v93 = vld [vmem:[#allocation5 + $0x58] sm:$0xff]
    %v94 = vld [vmem:[#allocation5 + $0x60] sm:$0xff]
    %v95 = vld [vmem:[#allocation5 + $0x68] sm:$0xff]
    %v96 = vld [vmem:[#allocation5 + $0x70] sm:$0xff]
    %v97 = vld [vmem:[#allocation5 + $0x78] sm:$0xff]
    %v98 = vld [vmem:[#allocation5 + $0x80] sm:$0xff]
    %v99 = vld [vmem:[#allocation5 + $0x88] sm:$0xff]
    %v100 = vld [vmem:[#allocation5 + $0x90] sm:$0xff]
    %v101 = vld [vmem:[#allocation5 + $0x98] sm:$0xff]
    %v102 = vld [vmem:[#allocation5 + $0xa0] sm:$0xff]
    %v103 = vld [vmem:[#allocation5 + $0xa8] sm:$0xff]
    %v104 = vld [vmem:[#allocation5 + $0xb0] sm:$0xff]
    %v105 = vld [vmem:[#allocation5 + $0xb8] sm:$0xff]
    %v106 = vld [vmem:[#allocation5 + $0xc0] sm:$0xff]
    %v107 = vld [vmem:[#allocation5 + $0xc8] sm:$0xff]
    %v108 = vld [vmem:[#allocation5 + $0xd0] sm:$0xff]
    %v109 = vld [vmem:[#allocation5 + $0xd8] sm:$0xff]
    %v110 = vld [vmem:[#allocation5 + $0xe0] sm:$0xff]
    %v111 = vld [vmem:[#allocation5 + $0xe8] sm:$0xff]
    %v112 = vld [vmem:[#allocation5 + $0xf0] sm:$0xff]
    %v113 = vld [vmem:[#allocation5 + $0xf8] sm:$0xff]
    %v116 = vunpack.c.l.b16 %v80
    %v117 = vunpack.c.l.b16 %v81
    %v118 = vpack.c.b16 %v117, %v116
    %v152 = vunpack.c.l.b16 %v82
    %v153 = vunpack.c.h.b16 %v82
    %v154 = vunpack.c.l.b16 %v83
    %v155 = vunpack.c.h.b16 %v83
    %v156 = vunpack.c.l.b16 %v84
    %v157 = vunpack.c.h.b16 %v84
    %v158 = vunpack.c.l.b16 %v85
    %v159 = vunpack.c.h.b16 %v85
    %v160 = vunpack.c.l.b16 %v86
    %v161 = vunpack.c.h.b16 %v86
    %v162 = vunpack.c.l.b16 %v87
    %v163 = vunpack.c.h.b16 %v87
    %v164 = vunpack.c.l.b16 %v88
    %v165 = vunpack.c.h.b16 %v88
    %v166 = vunpack.c.l.b16 %v89
    %v167 = vunpack.c.h.b16 %v89
    %v168 = vunpack.c.l.b16 %v90
    %v169 = vunpack.c.h.b16 %v90
    %v170 = vunpack.c.l.b16 %v91
    %v171 = vunpack.c.h.b16 %v91
    %v172 = vunpack.c.l.b16 %v92
    %v173 = vunpack.c.h.b16 %v92
    %v174 = vunpack.c.l.b16 %v93
    %v175 = vunpack.c.h.b16 %v93
    %v176 = vunpack.c.l.b16 %v94
    %v177 = vunpack.c.h.b16 %v94
    %v178 = vunpack.c.l.b16 %v95
    %v179 = vunpack.c.h.b16 %v95
    %v180 = vunpack.c.l.b16 %v96
    %v181 = vunpack.c.h.b16 %v96
    %v182 = vunpack.c.l.b16 %v97
    %v183 = vunpack.c.h.b16 %v97
    %v184 = vunpack.c.l.b16 %v98
    %v185 = vunpack.c.h.b16 %v98
    %v186 = vunpack.c.l.b16 %v99
    %v187 = vunpack.c.h.b16 %v99
    %v188 = vunpack.c.l.b16 %v100
    %v189 = vunpack.c.h.b16 %v100
    %v190 = vunpack.c.l.b16 %v101
    %v191 = vunpack.c.h.b16 %v101
    %v192 = vunpack.c.l.b16 %v102
    %v193 = vunpack.c.h.b16 %v102
    %v194 = vunpack.c.l.b16 %v103
    %v195 = vunpack.c.h.b16 %v103
    %v196 = vunpack.c.l.b16 %v104
    %v197 = vunpack.c.h.b16 %v104
    %v198 = vunpack.c.l.b16 %v105
    %v199 = vunpack.c.h.b16 %v105
    %v200 = vunpack.c.l.b16 %v106
    %v201 = vunpack.c.h.b16 %v106
    %v202 = vunpack.c.l.b16 %v107
    %v203 = vunpack.c.h.b16 %v107
    %v204 = vunpack.c.l.b16 %v108
    %v205 = vunpack.c.h.b16 %v108
    %v206 = vunpack.c.l.b16 %v109
    %v207 = vunpack.c.h.b16 %v109
    %v208 = vunpack.c.l.b16 %v110
    %v209 = vunpack.c.h.b16 %v110
    %v210 = vunpack.c.l.b16 %v111
    %v211 = vunpack.c.h.b16 %v111
    %v212 = vunpack.c.l.b16 %v112
    %v213 = vunpack.c.h.b16 %v112
    %v214 = vunpack.c.l.b16 %v113
    %v215 = vunpack.c.h.b16 %v113
    %v216 = vpack.c.b16 %v156, %v152
    %v217 = vpack.c.b16 %v157, %v153
    %v218 = vpack.c.b16 %v158, %v154
    %v219 = vpack.c.b16 %v159, %v155
    %v220 = vpack.c.b16 %v164, %v160
    %v221 = vpack.c.b16 %v165, %v161
    %v222 = vpack.c.b16 %v166, %v162
    %v223 = vpack.c.b16 %v167, %v163
    %v224 = vpack.c.b16 %v172, %v168
    %v225 = vpack.c.b16 %v173, %v169
    %v226 = vpack.c.b16 %v174, %v170
    %v227 = vpack.c.b16 %v175, %v171
    %v228 = vpack.c.b16 %v180, %v176
    %v229 = vpack.c.b16 %v181, %v177
    %v230 = vpack.c.b16 %v182, %v178
    %v231 = vpack.c.b16 %v183, %v179
    %v232 = vpack.c.b16 %v188, %v184
    %v233 = vpack.c.b16 %v189, %v185
    %v234 = vpack.c.b16 %v190, %v186
    %v235 = vpack.c.b16 %v191, %v187
    %v236 = vpack.c.b16 %v196, %v192
    %v237 = vpack.c.b16 %v197, %v193
    %v238 = vpack.c.b16 %v198, %v194
    %v239 = vpack.c.b16 %v199, %v195
    %v240 = vpack.c.b16 %v204, %v200
    %v241 = vpack.c.b16 %v205, %v201
    %v242 = vpack.c.b16 %v206, %v202
    %v243 = vpack.c.b16 %v207, %v203
    %v244 = vpack.c.b16 %v212, %v208
    %v245 = vpack.c.b16 %v213, %v209
    %v246 = vpack.c.b16 %v214, %v210
    %v247 = vpack.c.b16 %v215, %v211
    %280 = vmatprep.subr.bf16.mxu0 %v217
    %281 = vmatpush1.bf16.msra.mxu0 %v216
    %282 = vmatprep.subr.bf16.mxu0 %v221
    %283 = vmatpush1.bf16.msra.mxu0 %v220
    %284 = vmatprep.subr.bf16.mxu0 %v225
    %285 = vmatpush1.bf16.msra.mxu0 %v224
    %286 = vmatprep.subr.bf16.mxu0 %v229
    %287 = vmatpush1.bf16.msra.mxu0 %v228
    %288 = vmatprep.subr.bf16.mxu0 %v233
    %289 = vmatpush1.bf16.msra.mxu0 %v232
    %290 = vmatprep.subr.bf16.mxu0 %v237
    %291 = vmatpush1.bf16.msra.mxu0 %v236
    %292 = vmatprep.subr.bf16.mxu0 %v241
    %293 = vmatpush1.bf16.msra.mxu0 %v240
    %294 = vmatprep.subr.bf16.mxu0 %v245
    %295 = vmatpush1.bf16.msra.mxu0 %v244
    %296 = vmatprep.subr.bf16.mxu0 0
    %297 = vmatpush1.bf16.msra.mxu0 0
    %298 = vmatprep.subr.bf16.mxu0 0
    %299 = vmatpush1.bf16.msra.mxu0 0
    %300 = vmatprep.subr.bf16.mxu0 0
    %301 = vmatpush1.bf16.msra.mxu0 0
    %302 = vmatprep.subr.bf16.mxu0 0
    %303 = vmatpush1.bf16.msra.mxu0 0
    %304 = vmatprep.subr.bf16.mxu0 0
    %305 = vmatpush1.bf16.msra.mxu0 0
    %306 = vmatprep.subr.bf16.mxu0 0
    %307 = vmatpush1.bf16.msra.mxu0 0
    %308 = vmatprep.subr.bf16.mxu0 0
    %309 = vmatpush1.bf16.msra.mxu0 0
    %310 = vmatprep.subr.bf16.mxu0 0
    %311 = vmatpush1.bf16.msra.mxu0 0
    %312 = vmatprep.mubr.bf16.mxu0 0
    %313 = vmatmul.mubr.bf16.gmra.mrb[0].mxu0 %v118
    %v314 = vpop.f32.mrb[0].mxu0
    %v315 = vadd.f32 0.0, %v314
    %v316 = vpop.f32.mrb[0].mxu0
    %v317 = vadd.f32 0.0, %v316
    %v318 = vpop.f32.mrb[0].mxu0
    %v319 = vadd.f32 0.0, %v318
    %v320 = vpop.f32.mrb[0].mxu0
    %v321 = vadd.f32 0.0, %v320
    %322 = vdwg.mxu0
    %323 = vmatprep.subr.bf16.mxu0 %v219
    %324 = vmatpush1.bf16.msra.mxu0 %v218
    %325 = vmatprep.subr.bf16.mxu0 %v223
    %326 = vmatpush1.bf16.msra.mxu0 %v222
    %327 = vmatprep.subr.bf16.mxu0 %v227
    %328 = vmatpush1.bf16.msra.mxu0 %v226
    %329 = vmatprep.subr.bf16.mxu0 %v231
    %330 = vmatpush1.bf16.msra.mxu0 %v230
    %331 = vmatprep.subr.bf16.mxu0 %v235
    %332 = vmatpush1.bf16.msra.mxu0 %v234
    %333 = vmatprep.subr.bf16.mxu0 %v239
    %334 = vmatpush1.bf16.msra.mxu0 %v238
    %335 = vmatprep.subr.bf16.mxu0 %v243
    %336 = vmatpush1.bf16.msra.mxu0 %v242
    %337 = vmatprep.subr.bf16.mxu0 %v247
    %338 = vmatpush1.bf16.msra.mxu0 %v246
    %339 = vmatprep.subr.bf16.mxu0 0
    %340 = vmatpush1.bf16.msra.mxu0 0
    %341 = vmatprep.subr.bf16.mxu0 0
    %342 = vmatpush1.bf16.msra.mxu0 0
    %343 = vmatprep.subr.bf16.mxu0 0
    %344 = vmatpush1.bf16.msra.mxu0 0
    %345 = vmatprep.subr.bf16.mxu0 0
    %346 = vmatpush1.bf16.msra.mxu0 0
    %347 = vmatprep.subr.bf16.mxu0 0
    %348 = vmatpush1.bf16.msra.mxu0 0
    %349 = vmatprep.subr.bf16.mxu0 0
    %350 = vmatpush1.bf16.msra.mxu0 0
    %351 = vmatprep.subr.bf16.mxu0 0
    %352 = vmatpush1.bf16.msra.mxu0 0
    %353 = vmatprep.subr.bf16.mxu0 0
    %354 = vmatpush1.bf16.msra.mxu0 0
    %355 = vmatprep.mubr.bf16.mxu0 0
    %356 = vmatmul.mubr.bf16.gmra.mrb[0].mxu0 %v118
    %v357 = vpop.f32.mrb[0].mxu0
    %v358 = vadd.f32 0.0, %v357
    %v359 = vpop.f32.mrb[0].mxu0
    %v360 = vadd.f32 0.0, %v359
    %v361 = vpop.f32.mrb[0].mxu0
    %v362 = vadd.f32 0.0, %v361
    %v363 = vpop.f32.mrb[0].mxu0
    %v364 = vadd.f32 0.0, %v363
    %365 = vdwg.mxu0
    %vm366 = vcmp.gt.f32.partialorder %v315, 0.0
    %vm367 = vcmp.gt.f32.partialorder %v317, 0.0
    %vm368 = vcmp.gt.f32.partialorder %v358, 0.0
    %vm369 = vcmp.gt.f32.partialorder %v360, 0.0
    %vm370 = vcmp.gt.f32.partialorder %v319, 0.0
    %vm371 = vcmp.gt.f32.partialorder %v321, 0.0
    %vm372 = vcmp.gt.f32.partialorder %v362, 0.0
    %vm373 = vcmp.gt.f32.partialorder %v364, 0.0
    %v374 = vmul.f32 %v315, 0.2
    %v375 = vmul.f32 %v317, 0.2
    %v376 = vmul.f32 %v358, 0.2
    %v377 = vmul.f32 %v360, 0.2
    %v378 = vmul.f32 %v319, 0.2
    %v379 = vmul.f32 %v321, 0.2
    %v380 = vmul.f32 %v362, 0.2
    %v381 = vmul.f32 %v364, 0.2
    %v382 = vsel %vm366, %v315, %v374
    %v383 = vsel %vm367, %v317, %v375
    %v384 = vsel %vm368, %v358, %v376
    %v385 = vsel %vm369, %v360, %v377
    %v386 = vsel %vm370, %v319, %v378
    %v387 = vsel %vm371, %v321, %v379
    %v388 = vsel %vm372, %v362, %v380
    %v389 = vsel %vm373, %v364, %v381
    %v390 = vadd.f32 %v382, %v383
    %v391 = vadd.f32 %v390, %v384
    %v392 = vadd.f32 %v391, %v385
    %393 = vadd.xlane.f32.xlu0 %v392
    %v394 = vpop.xlane.xlu0 %393
    %v395 = vadd.f32 %v386, %v387
    %v396 = vadd.f32 %v395, %v388
    %v397 = vadd.f32 %v396, %v389
    %398 = vadd.xlane.f32.xlu0 %v397
    %v399 = vpop.xlane.xlu0 %398
    %v400 = vrcp.pop 512.0
    %v401 = vmul.f32 %v394, %v400
    %v402 = vmul.f32 %v399, %v400
    %v403 = vsub.f32 %v382, %v401
    %v404 = vsub.f32 %v383, %v401
    %v405 = vsub.f32 %v384, %v401
    %v406 = vsub.f32 %v385, %v401
    %v407 = vsub.f32 %v386, %v402
    %v408 = vsub.f32 %v387, %v402
    %v409 = vsub.f32 %v388, %v402
    %v410 = vsub.f32 %v389, %v402
    %v411 = vmul.f32 %v403, %v403
    %v412 = vmul.f32 %v404, %v404
    %v413 = vmul.f32 %v405, %v405
    %v414 = vmul.f32 %v406, %v406
    %v415 = vmul.f32 %v407, %v407
    %v416 = vmul.f32 %v408, %v408
    %v417 = vmul.f32 %v409, %v409
    %v418 = vmul.f32 %v410, %v410
    %v419 = vadd.f32 %v411, %v412
    %v420 = vadd.f32 %v419, %v413
    %v421 = vadd.f32 %v420, %v414
    %422 = vadd.xlane.f32.xlu0 %v421
    %v423 = vpop.xlane.xlu0 %422
    %v424 = vadd.f32 %v415, %v416
    %v425 = vadd.f32 %v424, %v417
    %v426 = vadd.f32 %v425, %v418
    %427 = vadd.xlane.f32.xlu0 %v426
    %v428 = vpop.xlane.xlu0 %427
    %v429 = vmul.f32 %v423, %v400
    %v430 = vmul.f32 %v428, %v400
    %v431 = vadd.f32 %v429, 1e-05
    %v432 = vadd.f32 %v430, 1e-05
    %v433 = vrsqrt.pop %v431
    %v434 = vrsqrt.pop %v432
    %v435 = vmul.f32 %v403, %v433
    %v436 = vmul.f32 %v404, %v433
    %v437 = vmul.f32 %v405, %v433
    %v438 = vmul.f32 %v406, %v433
    %v439 = vmul.f32 %v407, %v434
    %v440 = vmul.f32 %v408, %v434
    %v441 = vmul.f32 %v409, %v434
    %v442 = vmul.f32 %v410, %v434
    %v443 = vpack.c.bf16 %v439, %v435
    %v444 = vpack.c.bf16 %v440, %v436
    %v445 = vpack.c.bf16 %v441, %v437
    %v446 = vpack.c.bf16 %v442, %v438
    %v447 = vld [vmem:[#allocation7] sm:$0xff]
    %v448 = vld [vmem:[#allocation7 + $0x8] sm:$0xff]
    %v449 = vld [vmem:[#allocation7 + $0x10] sm:$0xff]
    %v450 = vld [vmem:[#allocation7 + $0x18] sm:$0xff]
    %v451 = vld [vmem:[#allocation7 + $0x20] sm:$0xff]
    %v452 = vld [vmem:[#allocation7 + $0x28] sm:$0xff]
    %v453 = vld [vmem:[#allocation7 + $0x30] sm:$0xff]
    %v454 = vld [vmem:[#allocation7 + $0x38] sm:$0xff]
    %v455 = vld [vmem:[#allocation7 + $0x40] sm:$0xff]
    %v456 = vld [vmem:[#allocation7 + $0x48] sm:$0xff]
    %v457 = vld [vmem:[#allocation7 + $0x50] sm:$0xff]
    %v458 = vld [vmem:[#allocation7 + $0x58] sm:$0xff]
    %v459 = vld [vmem:[#allocation7 + $0x60] sm:$0xff]
    %v460 = vld [vmem:[#allocation7 + $0x68] sm:$0xff]
    %v461 = vld [vmem:[#allocation7 + $0x70] sm:$0xff]
    %v462 = vld [vmem:[#allocation7 + $0x78] sm:$0xff]
    %v463 = vld [vmem:[#allocation7 + $0x80] sm:$0xff]
    %v464 = vld [vmem:[#allocation7 + $0x88] sm:$0xff]
    %v465 = vld [vmem:[#allocation7 + $0x90] sm:$0xff]
    %v466 = vld [vmem:[#allocation7 + $0x98] sm:$0xff]
    %v467 = vld [vmem:[#allocation7 + $0xa0] sm:$0xff]
    %v468 = vld [vmem:[#allocation7 + $0xa8] sm:$0xff]
    %v469 = vld [vmem:[#allocation7 + $0xb0] sm:$0xff]
    %v470 = vld [vmem:[#allocation7 + $0xb8] sm:$0xff]
    %v471 = vld [vmem:[#allocation7 + $0xc0] sm:$0xff]
    %v472 = vld [vmem:[#allocation7 + $0xc8] sm:$0xff]
    %v473 = vld [vmem:[#allocation7 + $0xd0] sm:$0xff]
    %v474 = vld [vmem:[#allocation7 + $0xd8] sm:$0xff]
    %v475 = vld [vmem:[#allocation7 + $0xe0] sm:$0xff]
    %v476 = vld [vmem:[#allocation7 + $0xe8] sm:$0xff]
    %v477 = vld [vmem:[#allocation7 + $0xf0] sm:$0xff]
    %v478 = vld [vmem:[#allocation7 + $0xf8] sm:$0xff]
    %v479 = vld [vmem:[#allocation7 + $0x100] sm:$0xff]
    %v480 = vld [vmem:[#allocation7 + $0x108] sm:$0xff]
    %v481 = vld [vmem:[#allocation7 + $0x110] sm:$0xff]
    %v482 = vld [vmem:[#allocation7 + $0x118] sm:$0xff]
    %v483 = vld [vmem:[#allocation7 + $0x120] sm:$0xff]
    %v484 = vld [vmem:[#allocation7 + $0x128] sm:$0xff]
    %v485 = vld [vmem:[#allocation7 + $0x130] sm:$0xff]
    %v486 = vld [vmem:[#allocation7 + $0x138] sm:$0xff]
    %v487 = vld [vmem:[#allocation7 + $0x140] sm:$0xff]
    %v488 = vld [vmem:[#allocation7 + $0x148] sm:$0xff]
    %v489 = vld [vmem:[#allocation7 + $0x150] sm:$0xff]
    %v490 = vld [vmem:[#allocation7 + $0x158] sm:$0xff]
    %v491 = vld [vmem:[#allocation7 + $0x160] sm:$0xff]
    %v492 = vld [vmem:[#allocation7 + $0x168] sm:$0xff]
    %v493 = vld [vmem:[#allocation7 + $0x170] sm:$0xff]
    %v494 = vld [vmem:[#allocation7 + $0x178] sm:$0xff]
    %v495 = vld [vmem:[#allocation7 + $0x180] sm:$0xff]
    %v496 = vld [vmem:[#allocation7 + $0x188] sm:$0xff]
    %v497 = vld [vmem:[#allocation7 + $0x190] sm:$0xff]
    %v498 = vld [vmem:[#allocation7 + $0x198] sm:$0xff]
    %v499 = vld [vmem:[#allocation7 + $0x1a0] sm:$0xff]
    %v500 = vld [vmem:[#allocation7 + $0x1a8] sm:$0xff]
    %v501 = vld [vmem:[#allocation7 + $0x1b0] sm:$0xff]
    %v502 = vld [vmem:[#allocation7 + $0x1b8] sm:$0xff]
    %v503 = vld [vmem:[#allocation7 + $0x1c0] sm:$0xff]
    %v504 = vld [vmem:[#allocation7 + $0x1c8] sm:$0xff]
    %v505 = vld [vmem:[#allocation7 + $0x1d0] sm:$0xff]
    %v506 = vld [vmem:[#allocation7 + $0x1d8] sm:$0xff]
    %v507 = vld [vmem:[#allocation7 + $0x1e0] sm:$0xff]
    %v508 = vld [vmem:[#allocation7 + $0x1e8] sm:$0xff]
    %v509 = vld [vmem:[#allocation7 + $0x1f0] sm:$0xff]
    %v510 = vld [vmem:[#allocation7 + $0x1f8] sm:$0xff]
    %v511 = vld [vmem:[#allocation7 + $0x200] sm:$0xff]
    %v512 = vld [vmem:[#allocation7 + $0x208] sm:$0xff]
    %v513 = vld [vmem:[#allocation7 + $0x210] sm:$0xff]
    %v514 = vld [vmem:[#allocation7 + $0x218] sm:$0xff]
    %v515 = vld [vmem:[#allocation7 + $0x220] sm:$0xff]
    %v516 = vld [vmem:[#allocation7 + $0x228] sm:$0xff]
    %v517 = vld [vmem:[#allocation7 + $0x230] sm:$0xff]
    %v518 = vld [vmem:[#allocation7 + $0x238] sm:$0xff]
    %v519 = vld [vmem:[#allocation7 + $0x240] sm:$0xff]
    %v520 = vld [vmem:[#allocation7 + $0x248] sm:$0xff]
    %v521 = vld [vmem:[#allocation7 + $0x250] sm:$0xff]
    %v522 = vld [vmem:[#allocation7 + $0x258] sm:$0xff]
    %v523 = vld [vmem:[#allocation7 + $0x260] sm:$0xff]
    %v524 = vld [vmem:[#allocation7 + $0x268] sm:$0xff]
    %v525 = vld [vmem:[#allocation7 + $0x270] sm:$0xff]
    %v526 = vld [vmem:[#allocation7 + $0x278] sm:$0xff]
    %v527 = vld [vmem:[#allocation7 + $0x280] sm:$0xff]
    %v528 = vld [vmem:[#allocation7 + $0x288] sm:$0xff]
    %v529 = vld [vmem:[#allocation7 + $0x290] sm:$0xff]
    %v530 = vld [vmem:[#allocation7 + $0x298] sm:$0xff]
    %v531 = vld [vmem:[#allocation7 + $0x2a0] sm:$0xff]
    %v532 = vld [vmem:[#allocation7 + $0x2a8] sm:$0xff]
    %v533 = vld [vmem:[#allocation7 + $0x2b0] sm:$0xff]
    %v534 = vld [vmem:[#allocation7 + $0x2b8] sm:$0xff]
    %v535 = vld [vmem:[#allocation7 + $0x2c0] sm:$0xff]
    %v536 = vld [vmem:[#allocation7 + $0x2c8] sm:$0xff]
    %v537 = vld [vmem:[#allocation7 + $0x2d0] sm:$0xff]
    %v538 = vld [vmem:[#allocation7 + $0x2d8] sm:$0xff]
    %v539 = vld [vmem:[#allocation7 + $0x2e0] sm:$0xff]
    %v540 = vld [vmem:[#allocation7 + $0x2e8] sm:$0xff]
    %v541 = vld [vmem:[#allocation7 + $0x2f0] sm:$0xff]
    %v542 = vld [vmem:[#allocation7 + $0x2f8] sm:$0xff]
    %v543 = vld [vmem:[#allocation7 + $0x300] sm:$0xff]
    %v544 = vld [vmem:[#allocation7 + $0x308] sm:$0xff]
    %v545 = vld [vmem:[#allocation7 + $0x310] sm:$0xff]
    %v546 = vld [vmem:[#allocation7 + $0x318] sm:$0xff]
    %v547 = vld [vmem:[#allocation7 + $0x320] sm:$0xff]
    %v548 = vld [vmem:[#allocation7 + $0x328] sm:$0xff]
    %v549 = vld [vmem:[#allocation7 + $0x330] sm:$0xff]
    %v550 = vld [vmem:[#allocation7 + $0x338] sm:$0xff]
    %v551 = vld [vmem:[#allocation7 + $0x340] sm:$0xff]
    %v552 = vld [vmem:[#allocation7 + $0x348] sm:$0xff]
    %v553 = vld [vmem:[#allocation7 + $0x350] sm:$0xff]
    %v554 = vld [vmem:[#allocation7 + $0x358] sm:$0xff]
    %v555 = vld [vmem:[#allocation7 + $0x360] sm:$0xff]
    %v556 = vld [vmem:[#allocation7 + $0x368] sm:$0xff]
    %v557 = vld [vmem:[#allocation7 + $0x370] sm:$0xff]
    %v558 = vld [vmem:[#allocation7 + $0x378] sm:$0xff]
    %v559 = vld [vmem:[#allocation7 + $0x380] sm:$0xff]
    %v560 = vld [vmem:[#allocation7 + $0x388] sm:$0xff]
    %v561 = vld [vmem:[#allocation7 + $0x390] sm:$0xff]
    %v562 = vld [vmem:[#allocation7 + $0x398] sm:$0xff]
    %v563 = vld [vmem:[#allocation7 + $0x3a0] sm:$0xff]
    %v564 = vld [vmem:[#allocation7 + $0x3a8] sm:$0xff]
    %v565 = vld [vmem:[#allocation7 + $0x3b0] sm:$0xff]
    %v566 = vld [vmem:[#allocation7 + $0x3b8] sm:$0xff]
    %v567 = vld [vmem:[#allocation7 + $0x3c0] sm:$0xff]
    %v568 = vld [vmem:[#allocation7 + $0x3c8] sm:$0xff]
    %v569 = vld [vmem:[#allocation7 + $0x3d0] sm:$0xff]
    %v570 = vld [vmem:[#allocation7 + $0x3d8] sm:$0xff]
    %v571 = vld [vmem:[#allocation7 + $0x3e0] sm:$0xff]
    %v572 = vld [vmem:[#allocation7 + $0x3e8] sm:$0xff]
    %v573 = vld [vmem:[#allocation7 + $0x3f0] sm:$0xff]
    %v574 = vld [vmem:[#allocation7 + $0x3f8] sm:$0xff]
    %v575 = vld [vmem:[%s3] sm:$0xf]
    %v577 = vlaneseq
    %v578 = vshrl.u32 %v577, 7
    %v579 = vsub.s32 0, %v578
    %v580 = vrot.slane %v575, %v579
    %v581 = vlaneseq
    %v582 = vshrl.u32 %v581, 7
    %v583 = vsub.s32 1, %v582
    %v584 = vrot.slane %v575, %v583
    %v585 = vlaneseq
    %v586 = vshrl.u32 %v585, 7
    %v587 = vsub.s32 2, %v586
    %v588 = vrot.slane %v575, %v587
    %v589 = vlaneseq
    %v590 = vshrl.u32 %v589, 7
    %v591 = vsub.s32 3, %v590
    %v592 = vrot.slane %v575, %v591
    %v725 = vunpack.c.l.b16 %v447
    %v726 = vunpack.c.h.b16 %v447
    %v727 = vunpack.c.l.b16 %v448
    %v728 = vunpack.c.h.b16 %v448
    %v729 = vunpack.c.l.b16 %v449
    %v730 = vunpack.c.h.b16 %v449
    %v731 = vunpack.c.l.b16 %v450
    %v732 = vunpack.c.h.b16 %v450
    %v733 = vunpack.c.l.b16 %v451
    %v734 = vunpack.c.h.b16 %v451
    %v735 = vunpack.c.l.b16 %v452
    %v736 = vunpack.c.h.b16 %v452
    %v737 = vunpack.c.l.b16 %v453
    %v738 = vunpack.c.h.b16 %v453
    %v739 = vunpack.c.l.b16 %v454
    %v740 = vunpack.c.h.b16 %v454
    %v741 = vunpack.c.l.b16 %v455
    %v742 = vunpack.c.h.b16 %v455
    %v743 = vunpack.c.l.b16 %v456
    %v744 = vunpack.c.h.b16 %v456
    %v745 = vunpack.c.l.b16 %v457
    %v746 = vunpack.c.h.b16 %v457
    %v747 = vunpack.c.l.b16 %v458
    %v748 = vunpack.c.h.b16 %v458
    %v749 = vunpack.c.l.b16 %v459
    %v750 = vunpack.c.h.b16 %v459
    %v751 = vunpack.c.l.b16 %v460
    %v752 = vunpack.c.h.b16 %v460
    %v753 = vunpack.c.l.b16 %v461
    %v754 = vunpack.c.h.b16 %v461
    %v755 = vunpack.c.l.b16 %v462
    %v756 = vunpack.c.h.b16 %v462
    %v757 = vunpack.c.l.b16 %v463
    %v758 = vunpack.c.h.b16 %v463
    %v759 = vunpack.c.l.b16 %v464
    %v760 = vunpack.c.h.b16 %v464
    %v761 = vunpack.c.l.b16 %v465
    %v762 = vunpack.c.h.b16 %v465
    %v763 = vunpack.c.l.b16 %v466
    %v764 = vunpack.c.h.b16 %v466
    %v765 = vunpack.c.l.b16 %v467
    %v766 = vunpack.c.h.b16 %v467
    %v767 = vunpack.c.l.b16 %v468
    %v768 = vunpack.c.h.b16 %v468
    %v769 = vunpack.c.l.b16 %v469
    %v770 = vunpack.c.h.b16 %v469
    %v771 = vunpack.c.l.b16 %v470
    %v772 = vunpack.c.h.b16 %v470
    %v773 = vunpack.c.l.b16 %v471
    %v774 = vunpack.c.h.b16 %v471
    %v775 = vunpack.c.l.b16 %v472
    %v776 = vunpack.c.h.b16 %v472
    %v777 = vunpack.c.l.b16 %v473
    %v778 = vunpack.c.h.b16 %v473
    %v779 = vunpack.c.l.b16 %v474
    %v780 = vunpack.c.h.b16 %v474
    %v781 = vunpack.c.l.b16 %v475
    %v782 = vunpack.c.h.b16 %v475
    %v783 = vunpack.c.l.b16 %v476
    %v784 = vunpack.c.h.b16 %v476
    %v785 = vunpack.c.l.b16 %v477
    %v786 = vunpack.c.h.b16 %v477
    %v787 = vunpack.c.l.b16 %v478
    %v788 = vunpack.c.h.b16 %v478
    %v789 = vunpack.c.l.b16 %v479
    %v790 = vunpack.c.h.b16 %v479
    %v791 = vunpack.c.l.b16 %v480
    %v792 = vunpack.c.h.b16 %v480
    %v793 = vunpack.c.l.b16 %v481
    %v794 = vunpack.c.h.b16 %v481
    %v795 = vunpack.c.l.b16 %v482
    %v796 = vunpack.c.h.b16 %v482
    %v797 = vunpack.c.l.b16 %v483
    %v798 = vunpack.c.h.b16 %v483
    %v799 = vunpack.c.l.b16 %v484
    %v800 = vunpack.c.h.b16 %v484
    %v801 = vunpack.c.l.b16 %v485
    %v802 = vunpack.c.h.b16 %v485
    %v803 = vunpack.c.l.b16 %v486
    %v804 = vunpack.c.h.b16 %v486
    %v805 = vunpack.c.l.b16 %v487
    %v806 = vunpack.c.h.b16 %v487
    %v807 = vunpack.c.l.b16 %v488
    %v808 = vunpack.c.h.b16 %v488
    %v809 = vunpack.c.l.b16 %v489
    %v810 = vunpack.c.h.b16 %v489
    %v811 = vunpack.c.l.b16 %v490
    %v812 = vunpack.c.h.b16 %v490
    %v813 = vunpack.c.l.b16 %v491
    %v814 = vunpack.c.h.b16 %v491
    %v815 = vunpack.c.l.b16 %v492
    %v816 = vunpack.c.h.b16 %v492
    %v817 = vunpack.c.l.b16 %v493
    %v818 = vunpack.c.h.b16 %v493
    %v819 = vunpack.c.l.b16 %v494
    %v820 = vunpack.c.h.b16 %v494
    %v821 = vunpack.c.l.b16 %v495
    %v822 = vunpack.c.h.b16 %v495
    %v823 = vunpack.c.l.b16 %v496
    %v824 = vunpack.c.h.b16 %v496
    %v825 = vunpack.c.l.b16 %v497
    %v826 = vunpack.c.h.b16 %v497
    %v827 = vunpack.c.l.b16 %v498
    %v828 = vunpack.c.h.b16 %v498
    %v829 = vunpack.c.l.b16 %v499
    %v830 = vunpack.c.h.b16 %v499
    %v831 = vunpack.c.l.b16 %v500
    %v832 = vunpack.c.h.b16 %v500
    %v833 = vunpack.c.l.b16 %v501
    %v834 = vunpack.c.h.b16 %v501
    %v835 = vunpack.c.l.b16 %v502
    %v836 = vunpack.c.h.b16 %v502
    %v837 = vunpack.c.l.b16 %v503
    %v838 = vunpack.c.h.b16 %v503
    %v839 = vunpack.c.l.b16 %v504
    %v840 = vunpack.c.h.b16 %v504
    %v841 = vunpack.c.l.b16 %v505
    %v842 = vunpack.c.h.b16 %v505
    %v843 = vunpack.c.l.b16 %v506
    %v844 = vunpack.c.h.b16 %v506
    %v845 = vunpack.c.l.b16 %v507
    %v846 = vunpack.c.h.b16 %v507
    %v847 = vunpack.c.l.b16 %v508
    %v848 = vunpack.c.h.b16 %v508
    %v849 = vunpack.c.l.b16 %v509
    %v850 = vunpack.c.h.b16 %v509
    %v851 = vunpack.c.l.b16 %v510
    %v852 = vunpack.c.h.b16 %v510
    %v853 = vunpack.c.l.b16 %v511
    %v854 = vunpack.c.h.b16 %v511
    %v855 = vunpack.c.l.b16 %v512
    %v856 = vunpack.c.h.b16 %v512
    %v857 = vunpack.c.l.b16 %v513
    %v858 = vunpack.c.h.b16 %v513
    %v859 = vunpack.c.l.b16 %v514
    %v860 = vunpack.c.h.b16 %v514
    %v861 = vunpack.c.l.b16 %v515
    %v862 = vunpack.c.h.b16 %v515
    %v863 = vunpack.c.l.b16 %v516
    %v864 = vunpack.c.h.b16 %v516
    %v865 = vunpack.c.l.b16 %v517
    %v866 = vunpack.c.h.b16 %v517
    %v867 = vunpack.c.l.b16 %v518
    %v868 = vunpack.c.h.b16 %v518
    %v869 = vunpack.c.l.b16 %v519
    %v870 = vunpack.c.h.b16 %v519
    %v871 = vunpack.c.l.b16 %v520
    %v872 = vunpack.c.h.b16 %v520
    %v873 = vunpack.c.l.b16 %v521
    %v874 = vunpack.c.h.b16 %v521
    %v875 = vunpack.c.l.b16 %v522
    %v876 = vunpack.c.h.b16 %v522
    %v877 = vunpack.c.l.b16 %v523
    %v878 = vunpack.c.h.b16 %v523
    %v879 = vunpack.c.l.b16 %v524
    %v880 = vunpack.c.h.b16 %v524
    %v881 = vunpack.c.l.b16 %v525
    %v882 = vunpack.c.h.b16 %v525
    %v883 = vunpack.c.l.b16 %v526
    %v884 = vunpack.c.h.b16 %v526
    %v885 = vunpack.c.l.b16 %v527
    %v886 = vunpack.c.h.b16 %v527
    %v887 = vunpack.c.l.b16 %v528
    %v888 = vunpack.c.h.b16 %v528
    %v889 = vunpack.c.l.b16 %v529
    %v890 = vunpack.c.h.b16 %v529
    %v891 = vunpack.c.l.b16 %v530
    %v892 = vunpack.c.h.b16 %v530
    %v893 = vunpack.c.l.b16 %v531
    %v894 = vunpack.c.h.b16 %v531
    %v895 = vunpack.c.l.b16 %v532
    %v896 = vunpack.c.h.b16 %v532
    %v897 = vunpack.c.l.b16 %v533
    %v898 = vunpack.c.h.b16 %v533
    %v899 = vunpack.c.l.b16 %v534
    %v900 = vunpack.c.h.b16 %v534
    %v901 = vunpack.c.l.b16 %v535
    %v902 = vunpack.c.h.b16 %v535
    %v903 = vunpack.c.l.b16 %v536
    %v904 = vunpack.c.h.b16 %v536
    %v905 = vunpack.c.l.b16 %v537
    %v906 = vunpack.c.h.b16 %v537
    %v907 = vunpack.c.l.b16 %v538
    %v908 = vunpack.c.h.b16 %v538
    %v909 = vunpack.c.l.b16 %v539
    %v910 = vunpack.c.h.b16 %v539
    %v911 = vunpack.c.l.b16 %v540
    %v912 = vunpack.c.h.b16 %v540
    %v913 = vunpack.c.l.b16 %v541
    %v914 = vunpack.c.h.b16 %v541
    %v915 = vunpack.c.l.b16 %v542
    %v916 = vunpack.c.h.b16 %v542
    %v917 = vunpack.c.l.b16 %v543
    %v918 = vunpack.c.h.b16 %v543
    %v919 = vunpack.c.l.b16 %v544
    %v920 = vunpack.c.h.b16 %v544
    %v921 = vunpack.c.l.b16 %v545
    %v922 = vunpack.c.h.b16 %v545
    %v923 = vunpack.c.l.b16 %v546
    %v924 = vunpack.c.h.b16 %v546
    %v925 = vunpack.c.l.b16 %v547
    %v926 = vunpack.c.h.b16 %v547
    %v927 = vunpack.c.l.b16 %v548
    %v928 = vunpack.c.h.b16 %v548
    %v929 = vunpack.c.l.b16 %v549
    %v930 = vunpack.c.h.b16 %v549
    %v931 = vunpack.c.l.b16 %v550
    %v932 = vunpack.c.h.b16 %v550
    %v933 = vunpack.c.l.b16 %v551
    %v934 = vunpack.c.h.b16 %v551
    %v935 = vunpack.c.l.b16 %v552
    %v936 = vunpack.c.h.b16 %v552
    %v937 = vunpack.c.l.b16 %v553
    %v938 = vunpack.c.h.b16 %v553
    %v939 = vunpack.c.l.b16 %v554
    %v940 = vunpack.c.h.b16 %v554
    %v941 = vunpack.c.l.b16 %v555
    %v942 = vunpack.c.h.b16 %v555
    %v943 = vunpack.c.l.b16 %v556
    %v944 = vunpack.c.h.b16 %v556
    %v945 = vunpack.c.l.b16 %v557
    %v946 = vunpack.c.h.b16 %v557
    %v947 = vunpack.c.l.b16 %v558
    %v948 = vunpack.c.h.b16 %v558
    %v949 = vunpack.c.l.b16 %v559
    %v950 = vunpack.c.h.b16 %v559
    %v951 = vunpack.c.l.b16 %v560
    %v952 = vunpack.c.h.b16 %v560
    %v953 = vunpack.c.l.b16 %v561
    %v954 = vunpack.c.h.b16 %v561
    %v955 = vunpack.c.l.b16 %v562
    %v956 = vunpack.c.h.b16 %v562
    %v957 = vunpack.c.l.b16 %v563
    %v958 = vunpack.c.h.b16 %v563
    %v959 = vunpack.c.l.b16 %v564
    %v960 = vunpack.c.h.b16 %v564
    %v961 = vunpack.c.l.b16 %v565
    %v962 = vunpack.c.h.b16 %v565
    %v963 = vunpack.c.l.b16 %v566
    %v964 = vunpack.c.h.b16 %v566
    %v965 = vunpack.c.l.b16 %v567
    %v966 = vunpack.c.h.b16 %v567
    %v967 = vunpack.c.l.b16 %v568
    %v968 = vunpack.c.h.b16 %v568
    %v969 = vunpack.c.l.b16 %v569
    %v970 = vunpack.c.h.b16 %v569
    %v971 = vunpack.c.l.b16 %v570
    %v972 = vunpack.c.h.b16 %v570
    %v973 = vunpack.c.l.b16 %v571
    %v974 = vunpack.c.h.b16 %v571
    %v975 = vunpack.c.l.b16 %v572
    %v976 = vunpack.c.h.b16 %v572
    %v977 = vunpack.c.l.b16 %v573
    %v978 = vunpack.c.h.b16 %v573
    %v979 = vunpack.c.l.b16 %v574
    %v980 = vunpack.c.h.b16 %v574
    %v981 = vpack.c.b16 %v729, %v725
    %v982 = vpack.c.b16 %v730, %v726
    %v983 = vpack.c.b16 %v731, %v727
    %v984 = vpack.c.b16 %v732, %v728
    %v985 = vpack.c.b16 %v737, %v733
    %v986 = vpack.c.b16 %v738, %v734
    %v987 = vpack.c.b16 %v739, %v735
    %v988 = vpack.c.b16 %v740, %v736
    %v989 = vpack.c.b16 %v745, %v741
    %v990 = vpack.c.b16 %v746, %v742
    %v991 = vpack.c.b16 %v747, %v743
    %v992 = vpack.c.b16 %v748, %v744
    %v993 = vpack.c.b16 %v753, %v749
    %v994 = vpack.c.b16 %v754, %v750
    %v995 = vpack.c.b16 %v755, %v751
    %v996 = vpack.c.b16 %v756, %v752
    %v997 = vpack.c.b16 %v761, %v757
    %v998 = vpack.c.b16 %v762, %v758
    %v999 = vpack.c.b16 %v763, %v759
    %v1000 = vpack.c.b16 %v764, %v760
    %v1001 = vpack.c.b16 %v769, %v765
    %v1002 = vpack.c.b16 %v770, %v766
    %v1003 = vpack.c.b16 %v771, %v767
    %v1004 = vpack.c.b16 %v772, %v768
    %v1005 = vpack.c.b16 %v777, %v773
    %v1006 = vpack.c.b16 %v778, %v774
    %v1007 = vpack.c.b16 %v779, %v775
    %v1008 = vpack.c.b16 %v780, %v776
    %v1009 = vpack.c.b16 %v785, %v781
    %v1010 = vpack.c.b16 %v786, %v782
    %v1011 = vpack.c.b16 %v787, %v783
    %v1012 = vpack.c.b16 %v788, %v784
    %v1013 = vpack.c.b16 %v793, %v789
    %v1014 = vpack.c.b16 %v794, %v790
    %v1015 = vpack.c.b16 %v795, %v791
    %v1016 = vpack.c.b16 %v796, %v792
    %v1017 = vpack.c.b16 %v801, %v797
    %v1018 = vpack.c.b16 %v802, %v798
    %v1019 = vpack.c.b16 %v803, %v799
    %v1020 = vpack.c.b16 %v804, %v800
    %v1021 = vpack.c.b16 %v809, %v805
    %v1022 = vpack.c.b16 %v810, %v806
    %v1023 = vpack.c.b16 %v811, %v807
    %v1024 = vpack.c.b16 %v812, %v808
    %v1025 = vpack.c.b16 %v817, %v813
    %v1026 = vpack.c.b16 %v818, %v814
    %v1027 = vpack.c.b16 %v819, %v815
    %v1028 = vpack.c.b16 %v820, %v816
    %v1029 = vpack.c.b16 %v825, %v821
    %v1030 = vpack.c.b16 %v826, %v822
    %v1031 = vpack.c.b16 %v827, %v823
    %v1032 = vpack.c.b16 %v828, %v824
    %v1033 = vpack.c.b16 %v833, %v829
    %v1034 = vpack.c.b16 %v834, %v830
    %v1035 = vpack.c.b16 %v835, %v831
    %v1036 = vpack.c.b16 %v836, %v832
    %v1037 = vpack.c.b16 %v841, %v837
    %v1038 = vpack.c.b16 %v842, %v838
    %v1039 = vpack.c.b16 %v843, %v839
    %v1040 = vpack.c.b16 %v844, %v840
    %v1041 = vpack.c.b16 %v849, %v845
    %v1042 = vpack.c.b16 %v850, %v846
    %v1043 = vpack.c.b16 %v851, %v847
    %v1044 = vpack.c.b16 %v852, %v848
    %v1045 = vpack.c.b16 %v857, %v853
    %v1046 = vpack.c.b16 %v858, %v854
    %v1047 = vpack.c.b16 %v859, %v855
    %v1048 = vpack.c.b16 %v860, %v856
    %v1049 = vpack.c.b16 %v865, %v861
    %v1050 = vpack.c.b16 %v866, %v862
    %v1051 = vpack.c.b16 %v867, %v863
    %v1052 = vpack.c.b16 %v868, %v864
    %v1053 = vpack.c.b16 %v873, %v869
    %v1054 = vpack.c.b16 %v874, %v870
    %v1055 = vpack.c.b16 %v875, %v871
    %v1056 = vpack.c.b16 %v876, %v872
    %v1057 = vpack.c.b16 %v881, %v877
    %v1058 = vpack.c.b16 %v882, %v878
    %v1059 = vpack.c.b16 %v883, %v879
    %v1060 = vpack.c.b16 %v884, %v880
    %v1061 = vpack.c.b16 %v889, %v885
    %v1062 = vpack.c.b16 %v890, %v886
    %v1063 = vpack.c.b16 %v891, %v887
    %v1064 = vpack.c.b16 %v892, %v888
    %v1065 = vpack.c.b16 %v897, %v893
    %v1066 = vpack.c.b16 %v898, %v894
    %v1067 = vpack.c.b16 %v899, %v895
    %v1068 = vpack.c.b16 %v900, %v896
    %v1069 = vpack.c.b16 %v905, %v901
    %v1070 = vpack.c.b16 %v906, %v902
    %v1071 = vpack.c.b16 %v907, %v903
    %v1072 = vpack.c.b16 %v908, %v904
    %v1073 = vpack.c.b16 %v913, %v909
    %v1074 = vpack.c.b16 %v914, %v910
    %v1075 = vpack.c.b16 %v915, %v911
    %v1076 = vpack.c.b16 %v916, %v912
    %v1077 = vpack.c.b16 %v921, %v917
    %v1078 = vpack.c.b16 %v922, %v918
    %v1079 = vpack.c.b16 %v923, %v919
    %v1080 = vpack.c.b16 %v924, %v920
    %v1081 = vpack.c.b16 %v929, %v925
    %v1082 = vpack.c.b16 %v930, %v926
    %v1083 = vpack.c.b16 %v931, %v927
    %v1084 = vpack.c.b16 %v932, %v928
    %v1085 = vpack.c.b16 %v937, %v933
    %v1086 = vpack.c.b16 %v938, %v934
    %v1087 = vpack.c.b16 %v939, %v935
    %v1088 = vpack.c.b16 %v940, %v936
    %v1089 = vpack.c.b16 %v945, %v941
    %v1090 = vpack.c.b16 %v946, %v942
    %v1091 = vpack.c.b16 %v947, %v943
    %v1092 = vpack.c.b16 %v948, %v944
    %v1093 = vpack.c.b16 %v953, %v949
    %v1094 = vpack.c.b16 %v954, %v950
    %v1095 = vpack.c.b16 %v955, %v951
    %v1096 = vpack.c.b16 %v956, %v952
    %v1097 = vpack.c.b16 %v961, %v957
    %v1098 = vpack.c.b16 %v962, %v958
    %v1099 = vpack.c.b16 %v963, %v959
    %v1100 = vpack.c.b16 %v964, %v960
    %v1101 = vpack.c.b16 %v969, %v965
    %v1102 = vpack.c.b16 %v970, %v966
    %v1103 = vpack.c.b16 %v971, %v967
    %v1104 = vpack.c.b16 %v972, %v968
    %v1105 = vpack.c.b16 %v977, %v973
    %v1106 = vpack.c.b16 %v978, %v974
    %v1107 = vpack.c.b16 %v979, %v975
    %v1108 = vpack.c.b16 %v980, %v976
    %1237 = vmatprep.subr.bf16.mxu0 %v982
    %1238 = vmatpush1.bf16.msra.mxu0 %v981
    %1239 = vmatprep.subr.bf16.mxu0 %v986
    %1240 = vmatpush1.bf16.msra.mxu0 %v985
    %1241 = vmatprep.subr.bf16.mxu0 %v990
    %1242 = vmatpush1.bf16.msra.mxu0 %v989
    %1243 = vmatprep.subr.bf16.mxu0 %v994
    %1244 = vmatpush1.bf16.msra.mxu0 %v993
    %1245 = vmatprep.subr.bf16.mxu0 %v998
    %1246 = vmatpush1.bf16.msra.mxu0 %v997
    %1247 = vmatprep.subr.bf16.mxu0 %v1002
    %1248 = vmatpush1.bf16.msra.mxu0 %v1001
    %1249 = vmatprep.subr.bf16.mxu0 %v1006
    %1250 = vmatpush1.bf16.msra.mxu0 %v1005
    %1251 = vmatprep.subr.bf16.mxu0 %v1010
    %1252 = vmatpush1.bf16.msra.mxu0 %v1009
    %1253 = vmatprep.subr.bf16.mxu0 %v1014
    %1254 = vmatpush1.bf16.msra.mxu0 %v1013
    %1255 = vmatprep.subr.bf16.mxu0 %v1018
    %1256 = vmatpush1.bf16.msra.mxu0 %v1017
    %1257 = vmatprep.subr.bf16.mxu0 %v1022
    %1258 = vmatpush1.bf16.msra.mxu0 %v1021
    %1259 = vmatprep.subr.bf16.mxu0 %v1026
    %1260 = vmatpush1.bf16.msra.mxu0 %v1025
    %1261 = vmatprep.subr.bf16.mxu0 %v1030
    %1262 = vmatpush1.bf16.msra.mxu0 %v1029
    %1263 = vmatprep.subr.bf16.mxu0 %v1034
    %1264 = vmatpush1.bf16.msra.mxu0 %v1033
    %1265 = vmatprep.subr.bf16.mxu0 %v1038
    %1266 = vmatpush1.bf16.msra.mxu0 %v1037
    %1267 = vmatprep.subr.bf16.mxu0 %v1042
    %1268 = vmatpush1.bf16.msra.mxu0 %v1041
    %1269 = vmatprep.mubr.bf16.mxu0 %v444
    %1270 = vmatmul.mubr.bf16.gmra.mrb[0].mxu0 %v443
    %v1271 = vpop.f32.mrb[0].mxu0
    %v1272 = vadd.f32 %v580, %v1271
    %v1273 = vpop.f32.mrb[0].mxu0
    %v1274 = vadd.f32 %v584, %v1273
    %v1275 = vpop.f32.mrb[0].mxu0
    %v1276 = vadd.f32 %v580, %v1275
    %v1277 = vpop.f32.mrb[0].mxu0
    %v1278 = vadd.f32 %v584, %v1277
    %1279 = vdwg.mxu0
    %1280 = vmatprep.subr.bf16.mxu0 %v1046
    %1281 = vmatpush1.bf16.msra.mxu0 %v1045
    %1282 = vmatprep.subr.bf16.mxu0 %v1050
    %1283 = vmatpush1.bf16.msra.mxu0 %v1049
    %1284 = vmatprep.subr.bf16.mxu0 %v1054
    %1285 = vmatpush1.bf16.msra.mxu0 %v1053
    %1286 = vmatprep.subr.bf16.mxu0 %v1058
    %1287 = vmatpush1.bf16.msra.mxu0 %v1057
    %1288 = vmatprep.subr.bf16.mxu0 %v1062
    %1289 = vmatpush1.bf16.msra.mxu0 %v1061
    %1290 = vmatprep.subr.bf16.mxu0 %v1066
    %1291 = vmatpush1.bf16.msra.mxu0 %v1065
    %1292 = vmatprep.subr.bf16.mxu0 %v1070
    %1293 = vmatpush1.bf16.msra.mxu0 %v1069
    %1294 = vmatprep.subr.bf16.mxu0 %v1074
    %1295 = vmatpush1.bf16.msra.mxu0 %v1073
    %1296 = vmatprep.subr.bf16.mxu0 %v1078
    %1297 = vmatpush1.bf16.msra.mxu0 %v1077
    %1298 = vmatprep.subr.bf16.mxu0 %v1082
    %1299 = vmatpush1.bf16.msra.mxu0 %v1081
    %1300 = vmatprep.subr.bf16.mxu0 %v1086
    %1301 = vmatpush1.bf16.msra.mxu0 %v1085
    %1302 = vmatprep.subr.bf16.mxu0 %v1090
    %1303 = vmatpush1.bf16.msra.mxu0 %v1089
    %1304 = vmatprep.subr.bf16.mxu0 %v1094
    %1305 = vmatpush1.bf16.msra.mxu0 %v1093
    %1306 = vmatprep.subr.bf16.mxu0 %v1098
    %1307 = vmatpush1.bf16.msra.mxu0 %v1097
    %1308 = vmatprep.subr.bf16.mxu0 %v1102
    %1309 = vmatpush1.bf16.msra.mxu0 %v1101
    %1310 = vmatprep.subr.bf16.mxu0 %v1106
    %1311 = vmatpush1.bf16.msra.mxu0 %v1105
    %1312 = vmatprep.mubr.bf16.mxu0 %v446
    %1313 = vmatmul.mubr.bf16.gmra.mrb[0].mxu0 %v445
    %v1314 = vpop.f32.mrb[0].mxu0
    %v1315 = vadd.f32 %v1272, %v1314
    %v1316 = vpop.f32.mrb[0].mxu0
    %v1317 = vadd.f32 %v1274, %v1316
    %v1318 = vpop.f32.mrb[0].mxu0
    %v1319 = vadd.f32 %v1276, %v1318
    %v1320 = vpop.f32.mrb[0].mxu0
    %v1321 = vadd.f32 %v1278, %v1320
    %1322 = vdwg.mxu0
    %1323 = vmatprep.subr.bf16.mxu0 %v984
    %1324 = vmatpush1.bf16.msra.mxu0 %v983
    %1325 = vmatprep.subr.bf16.mxu0 %v988
    %1326 = vmatpush1.bf16.msra.mxu0 %v987
    %1327 = vmatprep.subr.bf16.mxu0 %v992
    %1328 = vmatpush1.bf16.msra.mxu0 %v991
    %1329 = vmatprep.subr.bf16.mxu0 %v996
    %1330 = vmatpush1.bf16.msra.mxu0 %v995
    %1331 = vmatprep.subr.bf16.mxu0 %v1000
    %1332 = vmatpush1.bf16.msra.mxu0 %v999
    %1333 = vmatprep.subr.bf16.mxu0 %v1004
    %1334 = vmatpush1.bf16.msra.mxu0 %v1003
    %1335 = vmatprep.subr.bf16.mxu0 %v1008
    %1336 = vmatpush1.bf16.msra.mxu0 %v1007
    %1337 = vmatprep.subr.bf16.mxu0 %v1012
    %1338 = vmatpush1.bf16.msra.mxu0 %v1011
    %1339 = vmatprep.subr.bf16.mxu0 %v1016
    %1340 = vmatpush1.bf16.msra.mxu0 %v1015
    %1341 = vmatprep.subr.bf16.mxu0 %v1020
    %1342 = vmatpush1.bf16.msra.mxu0 %v1019
    %1343 = vmatprep.subr.bf16.mxu0 %v1024
    %1344 = vmatpush1.bf16.msra.mxu0 %v1023
    %1345 = vmatprep.subr.bf16.mxu0 %v1028
    %1346 = vmatpush1.bf16.msra.mxu0 %v1027
    %1347 = vmatprep.subr.bf16.mxu0 %v1032
    %1348 = vmatpush1.bf16.msra.mxu0 %v1031
    %1349 = vmatprep.subr.bf16.mxu0 %v1036
    %1350 = vmatpush1.bf16.msra.mxu0 %v1035
    %1351 = vmatprep.subr.bf16.mxu0 %v1040
    %1352 = vmatpush1.bf16.msra.mxu0 %v1039
    %1353 = vmatprep.subr.bf16.mxu0 %v1044
    %1354 = vmatpush1.bf16.msra.mxu0 %v1043
    %1355 = vmatprep.mubr.bf16.mxu0 %v444
    %1356 = vmatmul.mubr.bf16.gmra.mrb[0].mxu0 %v443
    %v1357 = vpop.f32.mrb[0].mxu0
    %v1358 = vadd.f32 %v588, %v1357
    %v1359 = vpop.f32.mrb[0].mxu0
    %v1360 = vadd.f32 %v592, %v1359
    %v1361 = vpop.f32.mrb[0].mxu0
    %v1362 = vadd.f32 %v588, %v1361
    %v1363 = vpop.f32.mrb[0].mxu0
    %v1364 = vadd.f32 %v592, %v1363
    %1365 = vdwg.mxu0
    %1366 = vmatprep.subr.bf16.mxu0 %v1048
    %1367 = vmatpush1.bf16.msra.mxu0 %v1047
    %1368 = vmatprep.subr.bf16.mxu0 %v1052
    %1369 = vmatpush1.bf16.msra.mxu0 %v1051
    %1370 = vmatprep.subr.bf16.mxu0 %v1056
    %1371 = vmatpush1.bf16.msra.mxu0 %v1055
    %1372 = vmatprep.subr.bf16.mxu0 %v1060
    %1373 = vmatpush1.bf16.msra.mxu0 %v1059
    %1374 = vmatprep.subr.bf16.mxu0 %v1064
    %1375 = vmatpush1.bf16.msra.mxu0 %v1063
    %1376 = vmatprep.subr.bf16.mxu0 %v1068
    %1377 = vmatpush1.bf16.msra.mxu0 %v1067
    %1378 = vmatprep.subr.bf16.mxu0 %v1072
    %1379 = vmatpush1.bf16.msra.mxu0 %v1071
    %1380 = vmatprep.subr.bf16.mxu0 %v1076
    %1381 = vmatpush1.bf16.msra.mxu0 %v1075
    %1382 = vmatprep.subr.bf16.mxu0 %v1080
    %1383 = vmatpush1.bf16.msra.mxu0 %v1079
    %1384 = vmatprep.subr.bf16.mxu0 %v1084
    %1385 = vmatpush1.bf16.msra.mxu0 %v1083
    %1386 = vmatprep.subr.bf16.mxu0 %v1088
    %1387 = vmatpush1.bf16.msra.mxu0 %v1087
    %1388 = vmatprep.subr.bf16.mxu0 %v1092
    %1389 = vmatpush1.bf16.msra.mxu0 %v1091
    %1390 = vmatprep.subr.bf16.mxu0 %v1096
    %1391 = vmatpush1.bf16.msra.mxu0 %v1095
    %1392 = vmatprep.subr.bf16.mxu0 %v1100
    %1393 = vmatpush1.bf16.msra.mxu0 %v1099
    %1394 = vmatprep.subr.bf16.mxu0 %v1104
    %1395 = vmatpush1.bf16.msra.mxu0 %v1103
    %1396 = vmatprep.subr.bf16.mxu0 %v1108
    %1397 = vmatpush1.bf16.msra.mxu0 %v1107
    %1398 = vmatprep.mubr.bf16.mxu0 %v446
    %1399 = vmatmul.mubr.bf16.gmra.mrb[0].mxu0 %v445
    %v1400 = vpop.f32.mrb[0].mxu0
    %v1401 = vadd.f32 %v1358, %v1400
    %v1402 = vpop.f32.mrb[0].mxu0
    %v1403 = vadd.f32 %v1360, %v1402
    %v1404 = vpop.f32.mrb[0].mxu0
    %v1405 = vadd.f32 %v1362, %v1404
    %v1406 = vpop.f32.mrb[0].mxu0
    %v1407 = vadd.f32 %v1364, %v1406
    %1408 = vdwg.mxu0
    %vm1409 = vcmp.gt.f32.partialorder %v1315, 0.0
    %vm1410 = vcmp.gt.f32.partialorder %v1317, 0.0
    %vm1411 = vcmp.gt.f32.partialorder %v1401, 0.0
    %vm1412 = vcmp.gt.f32.partialorder %v1403, 0.0
    %vm1413 = vcmp.gt.f32.partialorder %v1319, 0.0
    %vm1414 = vcmp.gt.f32.partialorder %v1321, 0.0
    %vm1415 = vcmp.gt.f32.partialorder %v1405, 0.0
    %vm1416 = vcmp.gt.f32.partialorder %v1407, 0.0
    %v1417 = vmul.f32 %v1315, 0.2
    %v1418 = vmul.f32 %v1317, 0.2
    %v1419 = vmul.f32 %v1401, 0.2
    %v1420 = vmul.f32 %v1403, 0.2
    %v1421 = vmul.f32 %v1319, 0.2
    %v1422 = vmul.f32 %v1321, 0.2
    %v1423 = vmul.f32 %v1405, 0.2
    %v1424 = vmul.f32 %v1407, 0.2
    %v1425 = vsel %vm1409, %v1315, %v1417
    %v1426 = vsel %vm1410, %v1317, %v1418
    %v1427 = vsel %vm1411, %v1401, %v1419
    %v1428 = vsel %vm1412, %v1403, %v1420
    %v1429 = vsel %vm1413, %v1319, %v1421
    %v1430 = vsel %vm1414, %v1321, %v1422
    %v1431 = vsel %vm1415, %v1405, %v1423
    %v1432 = vsel %vm1416, %v1407, %v1424
    %v1433 = vadd.f32 %v1425, %v1426
    %v1434 = vadd.f32 %v1433, %v1427
    %v1435 = vadd.f32 %v1434, %v1428
    %1436 = vadd.xlane.f32.xlu0 %v1435
    %v1437 = vpop.xlane.xlu0 %1436
    %v1438 = vadd.f32 %v1429, %v1430
    %v1439 = vadd.f32 %v1438, %v1431
    %v1440 = vadd.f32 %v1439, %v1432
    %1441 = vadd.xlane.f32.xlu0 %v1440
    %v1442 = vpop.xlane.xlu0 %1441
    %v1443 = vmul.f32 %v1437, %v400
    %v1444 = vmul.f32 %v1442, %v400
    %v1445 = vsub.f32 %v1425, %v1443
    %v1446 = vsub.f32 %v1426, %v1443
    %v1447 = vsub.f32 %v1427, %v1443
    %v1448 = vsub.f32 %v1428, %v1443
    %v1449 = vsub.f32 %v1429, %v1444
    %v1450 = vsub.f32 %v1430, %v1444
    %v1451 = vsub.f32 %v1431, %v1444
    %v1452 = vsub.f32 %v1432, %v1444
    %v1453 = vmul.f32 %v1445, %v1445
    %v1454 = vmul.f32 %v1446, %v1446
    %v1455 = vmul.f32 %v1447, %v1447
    %v1456 = vmul.f32 %v1448, %v1448
    %v1457 = vmul.f32 %v1449, %v1449
    %v1458 = vmul.f32 %v1450, %v1450
    %v1459 = vmul.f32 %v1451, %v1451
    %v1460 = vmul.f32 %v1452, %v1452
    %v1461 = vadd.f32 %v1453, %v1454
    %v1462 = vadd.f32 %v1461, %v1455
    %v1463 = vadd.f32 %v1462, %v1456
    %1464 = vadd.xlane.f32.xlu0 %v1463
    %v1465 = vpop.xlane.xlu0 %1464
    %v1466 = vadd.f32 %v1457, %v1458
    %v1467 = vadd.f32 %v1466, %v1459
    %v1468 = vadd.f32 %v1467, %v1460
    %1469 = vadd.xlane.f32.xlu0 %v1468
    %v1470 = vpop.xlane.xlu0 %1469
    %v1471 = vmul.f32 %v1465, %v400
    %v1472 = vmul.f32 %v1470, %v400
    %v1473 = vadd.f32 %v1471, 1e-05
    %v1474 = vadd.f32 %v1472, 1e-05
    %v1475 = vrsqrt.pop %v1473
    %v1476 = vrsqrt.pop %v1474
    %v1477 = vmul.f32 %v1445, %v1475
    %v1478 = vmul.f32 %v1446, %v1475
    %v1479 = vmul.f32 %v1447, %v1475
    %v1480 = vmul.f32 %v1448, %v1475
    %v1481 = vmul.f32 %v1449, %v1476
    %v1482 = vmul.f32 %v1450, %v1476
    %v1483 = vmul.f32 %v1451, %v1476
    %v1484 = vmul.f32 %v1452, %v1476
    %v1485 = vpack.c.bf16 %v1481, %v1477
    %v1486 = vpack.c.bf16 %v1482, %v1478
    %v1487 = vpack.c.bf16 %v1483, %v1479
    %v1488 = vpack.c.bf16 %v1484, %v1480
    %v1489 = vld [vmem:[#allocation8] sm:$0xf]
    %v1490 = vld [vmem:[#allocation8 + $0x4] sm:$0xf]
    %v1491 = vld [vmem:[#allocation8 + $0x8] sm:$0xf]
    %v1492 = vld [vmem:[#allocation8 + $0xc] sm:$0xf]
    %v1493 = vld [vmem:[#allocation8 + $0x10] sm:$0xf]
    %v1494 = vld [vmem:[#allocation8 + $0x14] sm:$0xf]
    %v1495 = vld [vmem:[#allocation8 + $0x18] sm:$0xf]
    %v1496 = vld [vmem:[#allocation8 + $0x1c] sm:$0xf]
    %v1497 = vld [vmem:[#allocation8 + $0x20] sm:$0xf]
    %v1498 = vld [vmem:[#allocation8 + $0x24] sm:$0xf]
    %v1499 = vld [vmem:[#allocation8 + $0x28] sm:$0xf]
    %v1500 = vld [vmem:[#allocation8 + $0x2c] sm:$0xf]
    %v1501 = vld [vmem:[#allocation8 + $0x30] sm:$0xf]
    %v1502 = vld [vmem:[#allocation8 + $0x34] sm:$0xf]
    %v1503 = vld [vmem:[#allocation8 + $0x38] sm:$0xf]
    %v1504 = vld [vmem:[#allocation8 + $0x3c] sm:$0xf]
    %v1505 = vld [vmem:[#allocation8 + $0x40] sm:$0xf]
    %v1506 = vld [vmem:[#allocation8 + $0x44] sm:$0xf]
    %v1507 = vld [vmem:[#allocation8 + $0x48] sm:$0xf]
    %v1508 = vld [vmem:[#allocation8 + $0x4c] sm:$0xf]
    %v1509 = vld [vmem:[#allocation8 + $0x50] sm:$0xf]
    %v1510 = vld [vmem:[#allocation8 + $0x54] sm:$0xf]
    %v1511 = vld [vmem:[#allocation8 + $0x58] sm:$0xf]
    %v1512 = vld [vmem:[#allocation8 + $0x5c] sm:$0xf]
    %v1513 = vld [vmem:[#allocation8 + $0x60] sm:$0xf]
    %v1514 = vld [vmem:[#allocation8 + $0x64] sm:$0xf]
    %v1515 = vld [vmem:[#allocation8 + $0x68] sm:$0xf]
    %v1516 = vld [vmem:[#allocation8 + $0x6c] sm:$0xf]
    %v1517 = vld [vmem:[#allocation8 + $0x70] sm:$0xf]
    %v1518 = vld [vmem:[#allocation8 + $0x74] sm:$0xf]
    %v1519 = vld [vmem:[#allocation8 + $0x78] sm:$0xf]
    %v1520 = vld [vmem:[#allocation8 + $0x7c] sm:$0xf]
    %v1521 = vld [vmem:[#allocation8 + $0x80] sm:$0xf]
    %v1522 = vld [vmem:[#allocation8 + $0x84] sm:$0xf]
    %v1523 = vld [vmem:[#allocation8 + $0x88] sm:$0xf]
    %v1524 = vld [vmem:[#allocation8 + $0x8c] sm:$0xf]
    %v1525 = vld [vmem:[#allocation8 + $0x90] sm:$0xf]
    %v1526 = vld [vmem:[#allocation8 + $0x94] sm:$0xf]
    %v1527 = vld [vmem:[#allocation8 + $0x98] sm:$0xf]
    %v1528 = vld [vmem:[#allocation8 + $0x9c] sm:$0xf]
    %v1529 = vld [vmem:[#allocation8 + $0xa0] sm:$0xf]
    %v1530 = vld [vmem:[#allocation8 + $0xa4] sm:$0xf]
    %v1531 = vld [vmem:[#allocation8 + $0xa8] sm:$0xf]
    %v1532 = vld [vmem:[#allocation8 + $0xac] sm:$0xf]
    %v1533 = vld [vmem:[#allocation8 + $0xb0] sm:$0xf]
    %v1534 = vld [vmem:[#allocation8 + $0xb4] sm:$0xf]
    %v1535 = vld [vmem:[#allocation8 + $0xb8] sm:$0xf]
    %v1536 = vld [vmem:[#allocation8 + $0xbc] sm:$0xf]
    %v1537 = vld [vmem:[#allocation8 + $0xc0] sm:$0xf]
    %v1538 = vld [vmem:[#allocation8 + $0xc4] sm:$0xf]
    %v1539 = vld [vmem:[#allocation8 + $0xc8] sm:$0xf]
    %v1540 = vld [vmem:[#allocation8 + $0xcc] sm:$0xf]
    %v1541 = vld [vmem:[#allocation8 + $0xd0] sm:$0xf]
    %v1542 = vld [vmem:[#allocation8 + $0xd4] sm:$0xf]
    %v1543 = vld [vmem:[#allocation8 + $0xd8] sm:$0xf]
    %v1544 = vld [vmem:[#allocation8 + $0xdc] sm:$0xf]
    %v1545 = vld [vmem:[#allocation8 + $0xe0] sm:$0xf]
    %v1546 = vld [vmem:[#allocation8 + $0xe4] sm:$0xf]
    %v1547 = vld [vmem:[#allocation8 + $0xe8] sm:$0xf]
    %v1548 = vld [vmem:[#allocation8 + $0xec] sm:$0xf]
    %v1549 = vld [vmem:[#allocation8 + $0xf0] sm:$0xf]
    %v1550 = vld [vmem:[#allocation8 + $0xf4] sm:$0xf]
    %v1551 = vld [vmem:[#allocation8 + $0xf8] sm:$0xf]
    %v1552 = vld [vmem:[#allocation8 + $0xfc] sm:$0xf]
    %v1553 = vld [vmem:[%s5] sm:$0x1]
    %v1555 = vlaneseq
    %v1556 = vshrl.u32 %v1555, 7
    %v1557 = vsub.s32 0, %v1556
    %v1558 = vrot.slane %v1553, %v1557
    %v1624 = vunpack.c.l.b16 %v1489
    %v1625 = vunpack.c.l.b16 %v1490
    %v1626 = vunpack.c.l.b16 %v1491
    %v1627 = vunpack.c.l.b16 %v1492
    %v1628 = vunpack.c.l.b16 %v1493
    %v1629 = vunpack.c.l.b16 %v1494
    %v1630 = vunpack.c.l.b16 %v1495
    %v1631 = vunpack.c.l.b16 %v1496
    %v1632 = vunpack.c.l.b16 %v1497
    %v1633 = vunpack.c.l.b16 %v1498
    %v1634 = vunpack.c.l.b16 %v1499
    %v1635 = vunpack.c.l.b16 %v1500
    %v1636 = vunpack.c.l.b16 %v1501
    %v1637 = vunpack.c.l.b16 %v1502
    %v1638 = vunpack.c.l.b16 %v1503
    %v1639 = vunpack.c.l.b16 %v1504
    %v1640 = vunpack.c.l.b16 %v1505
    %v1641 = vunpack.c.l.b16 %v1506
    %v1642 = vunpack.c.l.b16 %v1507
    %v1643 = vunpack.c.l.b16 %v1508
    %v1644 = vunpack.c.l.b16 %v1509
    %v1645 = vunpack.c.l.b16 %v1510
    %v1646 = vunpack.c.l.b16 %v1511
    %v1647 = vunpack.c.l.b16 %v1512
    %v1648 = vunpack.c.l.b16 %v1513
    %v1649 = vunpack.c.l.b16 %v1514
    %v1650 = vunpack.c.l.b16 %v1515
    %v1651 = vunpack.c.l.b16 %v1516
    %v1652 = vunpack.c.l.b16 %v1517
    %v1653 = vunpack.c.l.b16 %v1518
    %v1654 = vunpack.c.l.b16 %v1519
    %v1655 = vunpack.c.l.b16 %v1520
    %v1656 = vunpack.c.l.b16 %v1521
    %v1657 = vunpack.c.l.b16 %v1522
    %v1658 = vunpack.c.l.b16 %v1523
    %v1659 = vunpack.c.l.b16 %v1524
    %v1660 = vunpack.c.l.b16 %v1525
    %v1661 = vunpack.c.l.b16 %v1526
    %v1662 = vunpack.c.l.b16 %v1527
    %v1663 = vunpack.c.l.b16 %v1528
    %v1664 = vunpack.c.l.b16 %v1529
    %v1665 = vunpack.c.l.b16 %v1530
    %v1666 = vunpack.c.l.b16 %v1531
    %v1667 = vunpack.c.l.b16 %v1532
    %v1668 = vunpack.c.l.b16 %v1533
    %v1669 = vunpack.c.l.b16 %v1534
    %v1670 = vunpack.c.l.b16 %v1535
    %v1671 = vunpack.c.l.b16 %v1536
    %v1672 = vunpack.c.l.b16 %v1537
    %v1673 = vunpack.c.l.b16 %v1538
    %v1674 = vunpack.c.l.b16 %v1539
    %v1675 = vunpack.c.l.b16 %v1540
    %v1676 = vunpack.c.l.b16 %v1541
    %v1677 = vunpack.c.l.b16 %v1542
    %v1678 = vunpack.c.l.b16 %v1543
    %v1679 = vunpack.c.l.b16 %v1544
    %v1680 = vunpack.c.l.b16 %v1545
    %v1681 = vunpack.c.l.b16 %v1546
    %v1682 = vunpack.c.l.b16 %v1547
    %v1683 = vunpack.c.l.b16 %v1548
    %v1684 = vunpack.c.l.b16 %v1549
    %v1685 = vunpack.c.l.b16 %v1550
    %v1686 = vunpack.c.l.b16 %v1551
    %v1687 = vunpack.c.l.b16 %v1552
    %v1688 = vpack.c.b16 %v1625, %v1624
    %v1689 = vpack.c.b16 %v1627, %v1626
    %v1690 = vpack.c.b16 %v1629, %v1628
    %v1691 = vpack.c.b16 %v1631, %v1630
    %v1692 = vpack.c.b16 %v1633, %v1632
    %v1693 = vpack.c.b16 %v1635, %v1634
    %v1694 = vpack.c.b16 %v1637, %v1636
    %v1695 = vpack.c.b16 %v1639, %v1638
    %v1696 = vpack.c.b16 %v1641, %v1640
    %v1697 = vpack.c.b16 %v1643, %v1642
    %v1698 = vpack.c.b16 %v1645, %v1644
    %v1699 = vpack.c.b16 %v1647, %v1646
    %v1700 = vpack.c.b16 %v1649, %v1648
    %v1701 = vpack.c.b16 %v1651, %v1650
    %v1702 = vpack.c.b16 %v1653, %v1652
    %v1703 = vpack.c.b16 %v1655, %v1654
    %v1704 = vpack.c.b16 %v1657, %v1656
    %v1705 = vpack.c.b16 %v1659, %v1658
    %v1706 = vpack.c.b16 %v1661, %v1660
    %v1707 = vpack.c.b16 %v1663, %v1662
    %v1708 = vpack.c.b16 %v1665, %v1664
    %v1709 = vpack.c.b16 %v1667, %v1666
    %v1710 = vpack.c.b16 %v1669, %v1668
    %v1711 = vpack.c.b16 %v1671, %v1670
    %v1712 = vpack.c.b16 %v1673, %v1672
    %v1713 = vpack.c.b16 %v1675, %v1674
    %v1714 = vpack.c.b16 %v1677, %v1676
    %v1715 = vpack.c.b16 %v1679, %v1678
    %v1716 = vpack.c.b16 %v1681, %v1680
    %v1717 = vpack.c.b16 %v1683, %v1682
    %v1718 = vpack.c.b16 %v1685, %v1684
    %v1719 = vpack.c.b16 %v1687, %v1686
    %1752 = vmatprep.subr.bf16.mxu0 0
    %1753 = vmatpush1.bf16.msra.mxu0 %v1688
    %1754 = vmatprep.subr.bf16.mxu0 0
    %1755 = vmatpush1.bf16.msra.mxu0 %v1689
    %1756 = vmatprep.subr.bf16.mxu0 0
    %1757 = vmatpush1.bf16.msra.mxu0 %v1690
    %1758 = vmatprep.subr.bf16.mxu0 0
    %1759 = vmatpush1.bf16.msra.mxu0 %v1691
    %1760 = vmatprep.subr.bf16.mxu0 0
    %1761 = vmatpush1.bf16.msra.mxu0 %v1692
    %1762 = vmatprep.subr.bf16.mxu0 0
    %1763 = vmatpush1.bf16.msra.mxu0 %v1693
    %1764 = vmatprep.subr.bf16.mxu0 0
    %1765 = vmatpush1.bf16.msra.mxu0 %v1694
    %1766 = vmatprep.subr.bf16.mxu0 0
    %1767 = vmatpush1.bf16.msra.mxu0 %v1695
    %1768 = vmatprep.subr.bf16.mxu0 0
    %1769 = vmatpush1.bf16.msra.mxu0 %v1696
    %1770 = vmatprep.subr.bf16.mxu0 0
    %1771 = vmatpush1.bf16.msra.mxu0 %v1697
    %1772 = vmatprep.subr.bf16.mxu0 0
    %1773 = vmatpush1.bf16.msra.mxu0 %v1698
    %1774 = vmatprep.subr.bf16.mxu0 0
    %1775 = vmatpush1.bf16.msra.mxu0 %v1699
    %1776 = vmatprep.subr.bf16.mxu0 0
    %1777 = vmatpush1.bf16.msra.mxu0 %v1700
    %1778 = vmatprep.subr.bf16.mxu0 0
    %1779 = vmatpush1.bf16.msra.mxu0 %v1701
    %1780 = vmatprep.subr.bf16.mxu0 0
    %1781 = vmatpush1.bf16.msra.mxu0 %v1702
    %1782 = vmatprep.subr.bf16.mxu0 0
    %1783 = vmatpush1.bf16.msra.mxu0 %v1703
    %1784 = vmatprep.mubr.bf16.mxu0 %v1486
    %1785 = vmatmul.mubr.bf16.gmra.mrb[0].mxu0 %v1485
    %v1786 = vpop.f32.mrb[0].mxu0
    %v1787 = vadd.f32 %v1558, %v1786
    %v1788 = vpop.f32.mrb[0].mxu0
    %v1789 = vpop.f32.mrb[0].mxu0
    %v1790 = vadd.f32 %v1558, %v1789
    %v1791 = vpop.f32.mrb[0].mxu0
    %1792 = vdwg.mxu0
    %1793 = vmatprep.subr.bf16.mxu0 0
    %1794 = vmatpush1.bf16.msra.mxu0 %v1704
    %1795 = vmatprep.subr.bf16.mxu0 0
    %1796 = vmatpush1.bf16.msra.mxu0 %v1705
    %1797 = vmatprep.subr.bf16.mxu0 0
    %1798 = vmatpush1.bf16.msra.mxu0 %v1706
    %1799 = vmatprep.subr.bf16.mxu0 0
    %1800 = vmatpush1.bf16.msra.mxu0 %v1707
    %1801 = vmatprep.subr.bf16.mxu0 0
    %1802 = vmatpush1.bf16.msra.mxu0 %v1708
    %1803 = vmatprep.subr.bf16.mxu0 0
    %1804 = vmatpush1.bf16.msra.mxu0 %v1709
    %1805 = vmatprep.subr.bf16.mxu0 0
    %1806 = vmatpush1.bf16.msra.mxu0 %v1710
    %1807 = vmatprep.subr.bf16.mxu0 0
    %1808 = vmatpush1.bf16.msra.mxu0 %v1711
    %1809 = vmatprep.subr.bf16.mxu0 0
    %1810 = vmatpush1.bf16.msra.mxu0 %v1712
    %1811 = vmatprep.subr.bf16.mxu0 0
    %1812 = vmatpush1.bf16.msra.mxu0 %v1713
    %1813 = vmatprep.subr.bf16.mxu0 0
    %1814 = vmatpush1.bf16.msra.mxu0 %v1714
    %1815 = vmatprep.subr.bf16.mxu0 0
    %1816 = vmatpush1.bf16.msra.mxu0 %v1715
    %1817 = vmatprep.subr.bf16.mxu0 0
    %1818 = vmatpush1.bf16.msra.mxu0 %v1716
    %1819 = vmatprep.subr.bf16.mxu0 0
    %1820 = vmatpush1.bf16.msra.mxu0 %v1717
    %1821 = vmatprep.subr.bf16.mxu0 0
    %1822 = vmatpush1.bf16.msra.mxu0 %v1718
    %1823 = vmatprep.subr.bf16.mxu0 0
    %1824 = vmatpush1.bf16.msra.mxu0 %v1719
    %1825 = vmatprep.mubr.bf16.mxu0 %v1488
    %1826 = vmatmul.mubr.bf16.gmra.mrb[0].mxu0 %v1487
    %v1827 = vpop.f32.mrb[0].mxu0
    %v1828 = vadd.f32 %v1787, %v1827
    %v1829 = vpop.f32.mrb[0].mxu0
    %v1830 = vpop.f32.mrb[0].mxu0
    %v1831 = vadd.f32 %v1790, %v1830
    %v1832 = vpop.f32.mrb[0].mxu0
    %1833 = vdwg.mxu0
    %v1834 = vtanh.pop %v1828
    %v1835 = vtanh.pop %v1831
    %v1836 = vmul.f32 %v1834, 0.1
    %v1837 = vmul.f32 %v1835, 0.1
    %1838 = vst [vmem:[#allocation10] sm:$0xff] %v1836
    %1839 = vst [vmem:[#allocation10 + $0x8] sm:$0xff] %v1837
    // Predicated region
    $region42: #{tpu_custom_call.1} parent=1 // pred_check
      _
    $region43: #{tpu_custom_call.1} parent=1 // pred_check_branch
      %1841 = sbr.rel (0) target = $region45
    $region44: #{tpu_custom_call.1} parent=1 // pred_region
      %s1843 = ssub.s32 256, 256
      %1844 = vsyncadd [#allocation4], %s1843
      %s1845 = sshll.u32 [#allocation10], 4
      %s1846 = int_to_ptr.vmem [resolvable:$true] %s1845
      %1851 = dma.vmem_to_hbm [thread:$0]  %s1846, 256, %s6, [#allocation4], 128, 128, 8
    $region45: #{tpu_custom_call.1} parent=1 // pred_fallthru
      _
    // Predicated region
    $region46: #{tpu_custom_call.1} parent=1 // pred_check
      _
    $region47: #{tpu_custom_call.1} parent=1 // pred_check_branch
      %1853 = sbr.rel (0) target = $region49
    $region48: #{tpu_custom_call.1} parent=1 // pred_region
      %1854 = dma.done [#allocation4], 256
    $region49: #{tpu_custom_call.1} parent=1 // pred_fallthru
      _
    %1855 = vsyncpa [#allocation3], 1
    %1856 = vsyncpa [#allocation6], 1
    %1857 = vsyncpa [#allocation9], 1
    %1858 = vsyncpa [#allocation4], 1

</llo_original>
